<compile_context>
chip_gen: v6e
topology: v6e:2x2x1
jax: 0.10.0
libtpu: 0.0.40
codegen_flags: <defaults>
</compile_context>

<pallas_src>
import jax
import jax.numpy as jnp
from jax.experimental import pallas as pl
from jax.experimental.pallas import tpu as pltpu

NUM_TOKENS = 4
D_MODEL = 64
NHEAD = 2
HEAD_DIM = D_MODEL // NHEAD
DIM_FF = 256
LN_EPS = 1e-5
OUT_LANES = 128  # lane-dense classifier output (cols >= NUM_TOKENS are zero padding)


def _layer_norm(x, w, b):
    mean = jnp.mean(x, axis=-1, keepdims=True)
    var = jnp.mean((x - mean) ** 2, axis=-1, keepdims=True)
    return (x - mean) * jax.lax.rsqrt(var + LN_EPS) * w + b


def encoder_kernel(src_ref, emb_ref,
                   wq_ref, bq_ref, wkv_ref, bkv_ref,
                   wo_ref, bo_ref, ln1w_ref, ln1b_ref,
                   w1_ref, b1_ref, w2_ref, b2_ref,
                   ln2w_ref, ln2b_ref, wfc_ref, bfc_ref,
                   out_ref):
    tb, seq = src_ref.shape                    # static (TB, S)
    n = tb * seq

    ids = src_ref[...]                         # (TB, S) int32
    emb = emb_ref[...]                         # (4, D)  f32

    # ---- embedding lookup for the full sequence (needed for K/V): 4 selects, no gather ----
    ids3 = ids[:, :, None]                     # (TB, S, 1)
    x3 = jnp.zeros((tb, seq, D_MODEL), jnp.float32)
    for t in range(NUM_TOKENS):
        x3 = jnp.where(ids3 == t, emb[t:t + 1, :], x3)          # (TB, S, D)

    # ---- embedding for the last position only (free lane read of the last-token ids) ----
    ids_last = ids[:, seq - 1:seq]             # (TB, 1)
    x_last = jnp.zeros((tb, D_MODEL), jnp.float32)
    for t in range(NUM_TOKENS):
        x_last = jnp.where(ids_last == t, emb[t:t + 1, :], x_last)  # (TB, D)

    xb = x3.reshape(n, D_MODEL).astype(jnp.bfloat16)             # (N, D) bf16
    xlb = x_last.astype(jnp.bfloat16)                            # (TB, D) bf16

    # ---- fused K|V projection for all positions: one 128-lane matmul ----
    kv = jnp.dot(xb, wkv_ref[...], preferred_element_type=jnp.float32) + bkv_ref[...]  # (N, 2D)
    kv3 = kv.reshape(tb, seq, 2 * D_MODEL)                       # (TB, S, 2D)

    # ---- Q only for the last position (both heads in one matmul) ----
    q_last = jnp.dot(xlb, wq_ref[...], preferred_element_type=jnp.float32) + bq_ref[...]  # (TB, D)

    scale = jnp.float32(1.0 / (HEAD_DIM ** 0.5))
    head_outs = []
    for h in range(NHEAD):                      # tiny static loop (NHEAD = 2)
        k_h = kv3[:, :, h * HEAD_DIM:(h + 1) * HEAD_DIM]                         # (TB, S, hd)
        v_h = kv3[:, :, D_MODEL + h * HEAD_DIM:D_MODEL + (h + 1) * HEAD_DIM]     # (TB, S, hd)
        q_h = q_last[:, h * HEAD_DIM:(h + 1) * HEAD_DIM]                         # (TB, hd)

        # scores for the single (last) query: broadcast-mul + lane reduction, no transpose
        s_h = jnp.sum(q_h[:, None, :] * k_h, axis=-1, keepdims=True) * scale     # (TB, S, 1)
        s_h = s_h - jnp.max(s_h, axis=1, keepdims=True)
        p_h = jnp.exp(s_h)
        p_h = p_h * pl.reciprocal(jnp.sum(p_h, axis=1, keepdims=True), approx=True)

        # P @ V: broadcast probs over lanes, sublane-reduce over S
        o_h = jnp.sum(p_h * v_h, axis=1, keepdims=True).reshape(tb, HEAD_DIM)    # (TB, hd)
        head_outs.append(o_h)

    attn_cat = jnp.concatenate(head_outs, axis=-1)               # (TB, D)
    attn = jnp.dot(attn_cat.astype(jnp.bfloat16), wo_ref[...],
                   preferred_element_type=jnp.float32) + bo_ref[...]

    # ---- residual + post-norm (everything below is position-wise: last position only) ----
    y = _layer_norm(x_last + attn, ln1w_ref[...], ln1b_ref[...])

    h1 = jnp.dot(y.astype(jnp.bfloat16), w1_ref[...],
                 preferred_element_type=jnp.float32) + b1_ref[...]
    h1 = jnp.maximum(h1, 0.0)
    ff = jnp.dot(h1.astype(jnp.bfloat16), w2_ref[...],
                 preferred_element_type=jnp.float32) + b2_ref[...]

    z = _layer_norm(y + ff, ln2w_ref[...], ln2b_ref[...])

    # ---- classifier: 128-lane padded output (unmasked, lane-dense stores) ----
    out_ref[...] = jnp.dot(z.astype(jnp.bfloat16), wfc_ref[...],
                           preferred_element_type=jnp.float32) + bfc_ref[...]


def transformer_forward(src, params, *, batch_tile=128):
    """src: (B, S) int32 token ids -> (B, NUM_TOKENS) f32 logits (last position)."""
    src = src.astype(jnp.int32)
    B, S = src.shape

    # Batch tiling: always >= 2 grid steps so both v7x TensorCores are engaged; on single-TC
    # chips (v5e/v6e) the extra ~0.35us step is negligible. Large B uses batch_tile-sized steps.
    if B <= batch_tile:
        TB = ((-(-B // 2)) + 7) // 8 * 8          # round_up(ceil(B/2), 8)
        B_pad = 2 * TB
    else:
        TB = batch_tile
        B_pad = -(-B // TB) * TB
    if B_pad != B:
        src = jnp.pad(src, ((0, B_pad - B), (0, 0)))   # pad with token 0, sliced off below

    bf16 = jnp.bfloat16
    wfc_pad = jnp.zeros((D_MODEL, OUT_LANES), bf16).at[:, :NUM_TOKENS].set(
        params["w_fc"].astype(bf16))
    bfc_pad = jnp.zeros((1, OUT_LANES), jnp.float32).at[:, :NUM_TOKENS].set(params["b_fc"])

    weights = (
        params["emb"],                                           # f32 (4, D)
        params["w_q"].astype(bf16), params["b_q"],
        params["w_kv"].astype(bf16), params["b_kv"],
        params["w_o"].astype(bf16), params["b_o"],
        params["ln1_w"], params["ln1_b"],
        params["w_ff1"].astype(bf16), params["b_ff1"],
        params["w_ff2"].astype(bf16), params["b_ff2"],
        params["ln2_w"], params["ln2_b"],
        wfc_pad, bfc_pad,
    )

    # Constant weights: whole-array VMEM residents (no per-step double buffering).
    vmem_full = pl.BlockSpec(memory_space=pltpu.MemorySpace.VMEM)
    in_specs = [pl.BlockSpec((TB, S), lambda b: (b, 0))] + [vmem_full] * len(weights)
    out_specs = pl.BlockSpec((TB, OUT_LANES), lambda b: (b, 0))

    out = pl.pallas_call(
        encoder_kernel,
        out_shape=jax.ShapeDtypeStruct((B_pad, OUT_LANES), jnp.float32),
        grid=(B_pad // TB,),
        in_specs=in_specs,
        out_specs=out_specs,
        compiler_params=pltpu.CompilerParams(dimension_semantics=("parallel",)),
    )(src, *weights)

    return out[:B, :NUM_TOKENS]


def init_params(key):
    ks = jax.random.split(key, 7)

    def rnd(k, shape, scale=0.05):
        return (scale * jax.random.normal(k, shape)).astype(jnp.float32)

    return {
        "emb":   rnd(ks[0], (NUM_TOKENS, D_MODEL), 1.0),
        # attention projections in x @ W + b form, heads concatenated along output columns
        "w_q":   rnd(ks[1], (D_MODEL, D_MODEL)),            # [Q_h0 | Q_h1]
        "b_q":   jnp.zeros((1, D_MODEL), jnp.float32),
        "w_kv":  rnd(ks[2], (D_MODEL, 2 * D_MODEL)),        # [K_h0 | K_h1 | V_h0 | V_h1]
        "b_kv":  jnp.zeros((1, 2 * D_MODEL), jnp.float32),
        "w_o":   rnd(ks[3], (D_MODEL, D_MODEL)),            # input is [head0 | head1]
        "b_o":   jnp.zeros((1, D_MODEL), jnp.float32),
        "ln1_w": jnp.ones((1, D_MODEL), jnp.float32),
        "ln1_b": jnp.zeros((1, D_MODEL), jnp.float32),
        "w_ff1": rnd(ks[4], (D_MODEL, DIM_FF)),
        "b_ff1": jnp.zeros((1, DIM_FF), jnp.float32),
        "w_ff2": rnd(ks[5], (DIM_FF, D_MODEL)),
        "b_ff2": jnp.zeros((1, D_MODEL), jnp.float32),
        "ln2_w": jnp.ones((1, D_MODEL), jnp.float32),
        "ln2_b": jnp.zeros((1, D_MODEL), jnp.float32),
        "w_fc":  rnd(ks[6], (D_MODEL, NUM_TOKENS)),
        "b_fc":  jnp.zeros((1, NUM_TOKENS), jnp.float32),
    }


if __name__ == "__main__":
    key = jax.random.PRNGKey(0)
    pkey, skey = jax.random.split(key)
    params = init_params(pkey)

    B, S = 2, 8
    src = jax.random.randint(skey, (B, S), 0, NUM_TOKENS, dtype=jnp.int32)

    out = jax.jit(transformer_forward)(src, params)
    out = jax.block_until_ready(out)
    assert out.shape == (B, NUM_TOKENS), out.shape
    assert out.dtype == jnp.float32
    assert bool(jnp.all(jnp.isfinite(out)))
    print("KERNEL_OK")
</pallas_src>

<mosaic_0001>
module attributes {stable_mosaic.version = 11 : i64} {
  func.func @encoder_kernel(%arg0: i32, %arg1: memref<8x8xi32, #tpu.memory_space<vmem>>, %arg2: memref<4x64xf32, #tpu.memory_space<vmem>>, %arg3: memref<64x64xbf16, #tpu.memory_space<vmem>>, %arg4: memref<1x64xf32, #tpu.memory_space<vmem>>, %arg5: memref<64x128xbf16, #tpu.memory_space<vmem>>, %arg6: memref<1x128xf32, #tpu.memory_space<vmem>>, %arg7: memref<64x64xbf16, #tpu.memory_space<vmem>>, %arg8: memref<1x64xf32, #tpu.memory_space<vmem>>, %arg9: memref<1x64xf32, #tpu.memory_space<vmem>>, %arg10: memref<1x64xf32, #tpu.memory_space<vmem>>, %arg11: memref<64x256xbf16, #tpu.memory_space<vmem>>, %arg12: memref<1x256xf32, #tpu.memory_space<vmem>>, %arg13: memref<256x64xbf16, #tpu.memory_space<vmem>>, %arg14: memref<1x64xf32, #tpu.memory_space<vmem>>, %arg15: memref<1x64xf32, #tpu.memory_space<vmem>>, %arg16: memref<1x64xf32, #tpu.memory_space<vmem>>, %arg17: memref<64x128xbf16, #tpu.memory_space<vmem>>, %arg18: memref<1x128xf32, #tpu.memory_space<vmem>>, %arg19: memref<8x128xf32, #tpu.memory_space<vmem>>) attributes {dimension_semantics = [#tpu.dimension_semantics<parallel>], iteration_bounds = array<i64: 2>, scalar_prefetch = 0 : i64, scratch_operands = 0 : i64, tpu.core_type = #tpu.core_type<tc>, window_params = [{transform_indices = @transform_0, window_bounds = array<i64: 8, 8>}, {pipeline_mode = #tpu.pipeline_mode<synchronous>, transform_indices = @transform_1, window_bounds = array<i64: 4, 64>}, {pipeline_mode = #tpu.pipeline_mode<synchronous>, transform_indices = @transform_2, window_bounds = array<i64: 64, 64>}, {pipeline_mode = #tpu.pipeline_mode<synchronous>, transform_indices = @transform_3, window_bounds = array<i64: 1, 64>}, {pipeline_mode = #tpu.pipeline_mode<synchronous>, transform_indices = @transform_4, window_bounds = array<i64: 64, 128>}, {pipeline_mode = #tpu.pipeline_mode<synchronous>, transform_indices = @transform_5, window_bounds = array<i64: 1, 128>}, {pipeline_mode = #tpu.pipeline_mode<synchronous>, transform_indices = @transform_6, window_bounds = array<i64: 64, 64>}, {pipeline_mode = #tpu.pipeline_mode<synchronous>, transform_indices = @transform_7, window_bounds = array<i64: 1, 64>}, {pipeline_mode = #tpu.pipeline_mode<synchronous>, transform_indices = @transform_8, window_bounds = array<i64: 1, 64>}, {pipeline_mode = #tpu.pipeline_mode<synchronous>, transform_indices = @transform_9, window_bounds = array<i64: 1, 64>}, {pipeline_mode = #tpu.pipeline_mode<synchronous>, transform_indices = @transform_10, window_bounds = array<i64: 64, 256>}, {pipeline_mode = #tpu.pipeline_mode<synchronous>, transform_indices = @transform_11, window_bounds = array<i64: 1, 256>}, {pipeline_mode = #tpu.pipeline_mode<synchronous>, transform_indices = @transform_12, window_bounds = array<i64: 256, 64>}, {pipeline_mode = #tpu.pipeline_mode<synchronous>, transform_indices = @transform_13, window_bounds = array<i64: 1, 64>}, {pipeline_mode = #tpu.pipeline_mode<synchronous>, transform_indices = @transform_14, window_bounds = array<i64: 1, 64>}, {pipeline_mode = #tpu.pipeline_mode<synchronous>, transform_indices = @transform_15, window_bounds = array<i64: 1, 64>}, {pipeline_mode = #tpu.pipeline_mode<synchronous>, transform_indices = @transform_16, window_bounds = array<i64: 64, 128>}, {pipeline_mode = #tpu.pipeline_mode<synchronous>, transform_indices = @transform_17, window_bounds = array<i64: 1, 128>}, {transform_indices = @transform_18, window_bounds = array<i64: 8, 128>}]} {
    %c0 = arith.constant 0 : index
    %c0_0 = arith.constant 0 : index
    %0 = vector.load %arg1[%c0, %c0_0] : memref<8x8xi32, #tpu.memory_space<vmem>>, vector<8x8xi32>
    %c0_1 = arith.constant 0 : index
    %c0_2 = arith.constant 0 : index
    %1 = vector.load %arg2[%c0_1, %c0_2] : memref<4x64xf32, #tpu.memory_space<vmem>>, vector<4x64xf32>
    %2 = vector.shape_cast %0 : vector<8x8xi32> to vector<8x8x1xi32>
    %cst = arith.constant 0.000000e+00 : f32
    %3 = vector.broadcast %cst : f32 to vector<8x8x64xf32>
    %c0_i32 = arith.constant 0 : i32
    %4 = vector.broadcast %c0_i32 : i32 to vector<8x8x1xi32>
    %5 = arith.cmpi eq, %2, %4 : vector<8x8x1xi32>
    %6 = vector.extract_strided_slice %1 {offsets = [0, 0], sizes = [1, 64], strides = [1, 1]} : vector<4x64xf32> to vector<1x64xf32>
    %7 = vector.shape_cast %5 : vector<8x8x1xi1> to vector<8x8x1xi1>
    %8 = vector.broadcast %7 : vector<8x8x1xi1> to vector<8x8x64xi1>
    %9 = vector.shape_cast %6 : vector<1x64xf32> to vector<1x1x64xf32>
    %10 = vector.broadcast %9 : vector<1x1x64xf32> to vector<8x8x64xf32>
    %11 = arith.select %8, %10, %3 : vector<8x8x64xi1>, vector<8x8x64xf32>
    %c1_i32 = arith.constant 1 : i32
    %12 = vector.broadcast %c1_i32 : i32 to vector<8x8x1xi32>
    %13 = arith.cmpi eq, %2, %12 : vector<8x8x1xi32>
    %14 = vector.extract_strided_slice %1 {offsets = [1, 0], sizes = [1, 64], strides = [1, 1]} : vector<4x64xf32> to vector<1x64xf32>
    %15 = vector.shape_cast %13 : vector<8x8x1xi1> to vector<8x8x1xi1>
    %16 = vector.broadcast %15 : vector<8x8x1xi1> to vector<8x8x64xi1>
    %17 = vector.shape_cast %14 : vector<1x64xf32> to vector<1x1x64xf32>
    %18 = vector.broadcast %17 : vector<1x1x64xf32> to vector<8x8x64xf32>
    %19 = arith.select %16, %18, %11 : vector<8x8x64xi1>, vector<8x8x64xf32>
    %c2_i32 = arith.constant 2 : i32
    %20 = vector.broadcast %c2_i32 : i32 to vector<8x8x1xi32>
    %21 = arith.cmpi eq, %2, %20 : vector<8x8x1xi32>
    %22 = vector.extract_strided_slice %1 {offsets = [2, 0], sizes = [1, 64], strides = [1, 1]} : vector<4x64xf32> to vector<1x64xf32>
    %23 = vector.shape_cast %21 : vector<8x8x1xi1> to vector<8x8x1xi1>
    %24 = vector.broadcast %23 : vector<8x8x1xi1> to vector<8x8x64xi1>
    %25 = vector.shape_cast %22 : vector<1x64xf32> to vector<1x1x64xf32>
    %26 = vector.broadcast %25 : vector<1x1x64xf32> to vector<8x8x64xf32>
    %27 = arith.select %24, %26, %19 : vector<8x8x64xi1>, vector<8x8x64xf32>
    %c3_i32 = arith.constant 3 : i32
    %28 = vector.broadcast %c3_i32 : i32 to vector<8x8x1xi32>
    %29 = arith.cmpi eq, %2, %28 : vector<8x8x1xi32>
    %30 = vector.extract_strided_slice %1 {offsets = [3, 0], sizes = [1, 64], strides = [1, 1]} : vector<4x64xf32> to vector<1x64xf32>
    %31 = vector.shape_cast %29 : vector<8x8x1xi1> to vector<8x8x1xi1>
    %32 = vector.broadcast %31 : vector<8x8x1xi1> to vector<8x8x64xi1>
    %33 = vector.shape_cast %30 : vector<1x64xf32> to vector<1x1x64xf32>
    %34 = vector.broadcast %33 : vector<1x1x64xf32> to vector<8x8x64xf32>
    %35 = arith.select %32, %34, %27 : vector<8x8x64xi1>, vector<8x8x64xf32>
    %36 = vector.extract_strided_slice %0 {offsets = [0, 7], sizes = [8, 1], strides = [1, 1]} : vector<8x8xi32> to vector<8x1xi32>
    %cst_3 = arith.constant 0.000000e+00 : f32
    %37 = vector.broadcast %cst_3 : f32 to vector<8x64xf32>
    %c0_i32_4 = arith.constant 0 : i32
    %38 = vector.broadcast %c0_i32_4 : i32 to vector<8x1xi32>
    %39 = arith.cmpi eq, %36, %38 : vector<8x1xi32>
    %40 = vector.extract_strided_slice %1 {offsets = [0, 0], sizes = [1, 64], strides = [1, 1]} : vector<4x64xf32> to vector<1x64xf32>
    %41 = vector.shape_cast %39 : vector<8x1xi1> to vector<8x1xi1>
    %42 = vector.broadcast %41 : vector<8x1xi1> to vector<8x64xi1>
    %43 = vector.shape_cast %40 : vector<1x64xf32> to vector<1x64xf32>
    %44 = vector.broadcast %43 : vector<1x64xf32> to vector<8x64xf32>
    %45 = arith.select %42, %44, %37 : vector<8x64xi1>, vector<8x64xf32>
    %c1_i32_5 = arith.constant 1 : i32
    %46 = vector.broadcast %c1_i32_5 : i32 to vector<8x1xi32>
    %47 = arith.cmpi eq, %36, %46 : vector<8x1xi32>
    %48 = vector.extract_strided_slice %1 {offsets = [1, 0], sizes = [1, 64], strides = [1, 1]} : vector<4x64xf32> to vector<1x64xf32>
    %49 = vector.shape_cast %47 : vector<8x1xi1> to vector<8x1xi1>
    %50 = vector.broadcast %49 : vector<8x1xi1> to vector<8x64xi1>
    %51 = vector.shape_cast %48 : vector<1x64xf32> to vector<1x64xf32>
    %52 = vector.broadcast %51 : vector<1x64xf32> to vector<8x64xf32>
    %53 = arith.select %50, %52, %45 : vector<8x64xi1>, vector<8x64xf32>
    %c2_i32_6 = arith.constant 2 : i32
    %54 = vector.broadcast %c2_i32_6 : i32 to vector<8x1xi32>
    %55 = arith.cmpi eq, %36, %54 : vector<8x1xi32>
    %56 = vector.extract_strided_slice %1 {offsets = [2, 0], sizes = [1, 64], strides = [1, 1]} : vector<4x64xf32> to vector<1x64xf32>
    %57 = vector.shape_cast %55 : vector<8x1xi1> to vector<8x1xi1>
    %58 = vector.broadcast %57 : vector<8x1xi1> to vector<8x64xi1>
    %59 = vector.shape_cast %56 : vector<1x64xf32> to vector<1x64xf32>
    %60 = vector.broadcast %59 : vector<1x64xf32> to vector<8x64xf32>
    %61 = arith.select %58, %60, %53 : vector<8x64xi1>, vector<8x64xf32>
    %c3_i32_7 = arith.constant 3 : i32
    %62 = vector.broadcast %c3_i32_7 : i32 to vector<8x1xi32>
    %63 = arith.cmpi eq, %36, %62 : vector<8x1xi32>
    %64 = vector.extract_strided_slice %1 {offsets = [3, 0], sizes = [1, 64], strides = [1, 1]} : vector<4x64xf32> to vector<1x64xf32>
    %65 = vector.shape_cast %63 : vector<8x1xi1> to vector<8x1xi1>
    %66 = vector.broadcast %65 : vector<8x1xi1> to vector<8x64xi1>
    %67 = vector.shape_cast %64 : vector<1x64xf32> to vector<1x64xf32>
    %68 = vector.broadcast %67 : vector<1x64xf32> to vector<8x64xf32>
    %69 = arith.select %66, %68, %61 : vector<8x64xi1>, vector<8x64xf32>
    %70 = vector.shape_cast %35 : vector<8x8x64xf32> to vector<64x64xf32>
    %71 = arith.truncf %70 : vector<64x64xf32> to vector<64x64xbf16>
    %72 = arith.truncf %69 : vector<8x64xf32> to vector<8x64xbf16>
    %c0_8 = arith.constant 0 : index
    %c0_9 = arith.constant 0 : index
    %73 = vector.load %arg5[%c0_8, %c0_9] : memref<64x128xbf16, #tpu.memory_space<vmem>>, vector<64x128xbf16>
    %cst_10 = arith.constant dense<0.000000e+00> : vector<64x128xf32>
    %74 = tpu.matmul %71, %73, %cst_10 {dimension_numbers = #tpu.dot_dimension_numbers<[1], [0], [0], [1], [0, 0, 1, 1], [], []>} : vector<64x64xbf16>, vector<64x128xbf16>, vector<64x128xf32> -> vector<64x128xf32>
    %c0_11 = arith.constant 0 : index
    %c0_12 = arith.constant 0 : index
    %75 = vector.load %arg6[%c0_11, %c0_12] : memref<1x128xf32, #tpu.memory_space<vmem>>, vector<1x128xf32>
    %76 = vector.broadcast %75 : vector<1x128xf32> to vector<64x128xf32>
    %77 = arith.addf %74, %76 : vector<64x128xf32>
    %78 = vector.shape_cast %77 : vector<64x128xf32> to vector<8x8x128xf32>
    %c0_13 = arith.constant 0 : index
    %c0_14 = arith.constant 0 : index
    %79 = vector.load %arg3[%c0_13, %c0_14] : memref<64x64xbf16, #tpu.memory_space<vmem>>, vector<64x64xbf16>
    %cst_15 = arith.constant dense<0.000000e+00> : vector<8x64xf32>
    %80 = tpu.matmul %72, %79, %cst_15 {dimension_numbers = #tpu.dot_dimension_numbers<[1], [0], [0], [1], [0, 0, 1, 1], [], []>} : vector<8x64xbf16>, vector<64x64xbf16>, vector<8x64xf32> -> vector<8x64xf32>
    %c0_16 = arith.constant 0 : index
    %c0_17 = arith.constant 0 : index
    %81 = vector.load %arg4[%c0_16, %c0_17] : memref<1x64xf32, #tpu.memory_space<vmem>>, vector<1x64xf32>
    %82 = vector.broadcast %81 : vector<1x64xf32> to vector<8x64xf32>
    %83 = arith.addf %80, %82 : vector<8x64xf32>
    %84 = vector.extract_strided_slice %78 {offsets = [0, 0, 0], sizes = [8, 8, 32], strides = [1, 1, 1]} : vector<8x8x128xf32> to vector<8x8x32xf32>
    %85 = vector.extract_strided_slice %78 {offsets = [0, 0, 64], sizes = [8, 8, 32], strides = [1, 1, 1]} : vector<8x8x128xf32> to vector<8x8x32xf32>
    %86 = vector.extract_strided_slice %83 {offsets = [0, 0], sizes = [8, 32], strides = [1, 1]} : vector<8x64xf32> to vector<8x32xf32>
    %87 = vector.shape_cast %86 : vector<8x32xf32> to vector<8x1x32xf32>
    %88 = vector.broadcast %87 : vector<8x1x32xf32> to vector<8x8x32xf32>
    %89 = arith.mulf %88, %84 : vector<8x8x32xf32>
    %cst_18 = arith.constant dense<0.000000e+00> : vector<8x8xf32>
    %90 = vector.multi_reduction <add>, %89, %cst_18 [2] : vector<8x8x32xf32> to vector<8x8xf32>
    %91 = vector.shape_cast %90 : vector<8x8xf32> to vector<8x8x1xf32>
    %cst_19 = arith.constant 0.176776692 : f32
    %92 = vector.broadcast %cst_19 : f32 to vector<8x8x1xf32>
    %93 = arith.mulf %91, %92 : vector<8x8x1xf32>
    %cst_20 = arith.constant dense<0xFF800000> : vector<8x1xf32>
    %94 = vector.multi_reduction <maximumf>, %93, %cst_20 [1] : vector<8x8x1xf32> to vector<8x1xf32>
    %95 = vector.shape_cast %94 : vector<8x1xf32> to vector<8x1x1xf32>
    %96 = vector.broadcast %95 : vector<8x1x1xf32> to vector<8x8x1xf32>
    %97 = arith.subf %93, %96 : vector<8x8x1xf32>
    %98 = math.exp %97 : vector<8x8x1xf32>
    %cst_21 = arith.constant dense<0.000000e+00> : vector<8x1xf32>
    %99 = vector.multi_reduction <add>, %98, %cst_21 [1] : vector<8x8x1xf32> to vector<8x1xf32>
    %100 = vector.shape_cast %99 : vector<8x1xf32> to vector<8x1x1xf32>
    %101 = tpu.reciprocal %100 {approx = true} : vector<8x1x1xf32> -> vector<8x1x1xf32>
    %102 = vector.broadcast %101 : vector<8x1x1xf32> to vector<8x8x1xf32>
    %103 = arith.mulf %98, %102 : vector<8x8x1xf32>
    %104 = vector.broadcast %103 : vector<8x8x1xf32> to vector<8x8x32xf32>
    %105 = arith.mulf %104, %85 : vector<8x8x32xf32>
    %cst_22 = arith.constant dense<0.000000e+00> : vector<8x32xf32>
    %106 = vector.multi_reduction <add>, %105, %cst_22 [1] : vector<8x8x32xf32> to vector<8x32xf32>
    %107 = vector.shape_cast %106 : vector<8x32xf32> to vector<8x1x32xf32>
    %108 = vector.shape_cast %107 : vector<8x1x32xf32> to vector<8x32xf32>
    %109 = vector.extract_strided_slice %78 {offsets = [0, 0, 32], sizes = [8, 8, 32], strides = [1, 1, 1]} : vector<8x8x128xf32> to vector<8x8x32xf32>
    %110 = vector.extract_strided_slice %78 {offsets = [0, 0, 96], sizes = [8, 8, 32], strides = [1, 1, 1]} : vector<8x8x128xf32> to vector<8x8x32xf32>
    %111 = vector.extract_strided_slice %83 {offsets = [0, 32], sizes = [8, 32], strides = [1, 1]} : vector<8x64xf32> to vector<8x32xf32>
    %112 = vector.shape_cast %111 : vector<8x32xf32> to vector<8x1x32xf32>
    %113 = vector.broadcast %112 : vector<8x1x32xf32> to vector<8x8x32xf32>
    %114 = arith.mulf %113, %109 : vector<8x8x32xf32>
    %cst_23 = arith.constant dense<0.000000e+00> : vector<8x8xf32>
    %115 = vector.multi_reduction <add>, %114, %cst_23 [2] : vector<8x8x32xf32> to vector<8x8xf32>
    %116 = vector.shape_cast %115 : vector<8x8xf32> to vector<8x8x1xf32>
    %cst_24 = arith.constant 0.176776692 : f32
    %117 = vector.broadcast %cst_24 : f32 to vector<8x8x1xf32>
    %118 = arith.mulf %116, %117 : vector<8x8x1xf32>
    %cst_25 = arith.constant dense<0xFF800000> : vector<8x1xf32>
    %119 = vector.multi_reduction <maximumf>, %118, %cst_25 [1] : vector<8x8x1xf32> to vector<8x1xf32>
    %120 = vector.shape_cast %119 : vector<8x1xf32> to vector<8x1x1xf32>
    %121 = vector.broadcast %120 : vector<8x1x1xf32> to vector<8x8x1xf32>
    %122 = arith.subf %118, %121 : vector<8x8x1xf32>
    %123 = math.exp %122 : vector<8x8x1xf32>
    %cst_26 = arith.constant dense<0.000000e+00> : vector<8x1xf32>
    %124 = vector.multi_reduction <add>, %123, %cst_26 [1] : vector<8x8x1xf32> to vector<8x1xf32>
    %125 = vector.shape_cast %124 : vector<8x1xf32> to vector<8x1x1xf32>
    %126 = tpu.reciprocal %125 {approx = true} : vector<8x1x1xf32> -> vector<8x1x1xf32>
    %127 = vector.broadcast %126 : vector<8x1x1xf32> to vector<8x8x1xf32>
    %128 = arith.mulf %123, %127 : vector<8x8x1xf32>
    %129 = vector.broadcast %128 : vector<8x8x1xf32> to vector<8x8x32xf32>
    %130 = arith.mulf %129, %110 : vector<8x8x32xf32>
    %cst_27 = arith.constant dense<0.000000e+00> : vector<8x32xf32>
    %131 = vector.multi_reduction <add>, %130, %cst_27 [1] : vector<8x8x32xf32> to vector<8x32xf32>
    %132 = vector.shape_cast %131 : vector<8x32xf32> to vector<8x1x32xf32>
    %133 = vector.shape_cast %132 : vector<8x1x32xf32> to vector<8x32xf32>
    %134 = tpu.concatenate %108, %133 in 1 : vector<8x32xf32>, vector<8x32xf32> -> vector<8x64xf32>
    %135 = arith.truncf %134 : vector<8x64xf32> to vector<8x64xbf16>
    %c0_28 = arith.constant 0 : index
    %c0_29 = arith.constant 0 : index
    %136 = vector.load %arg7[%c0_28, %c0_29] : memref<64x64xbf16, #tpu.memory_space<vmem>>, vector<64x64xbf16>
    %cst_30 = arith.constant dense<0.000000e+00> : vector<8x64xf32>
    %137 = tpu.matmul %135, %136, %cst_30 {dimension_numbers = #tpu.dot_dimension_numbers<[1], [0], [0], [1], [0, 0, 1, 1], [], []>} : vector<8x64xbf16>, vector<64x64xbf16>, vector<8x64xf32> -> vector<8x64xf32>
    %c0_31 = arith.constant 0 : index
    %c0_32 = arith.constant 0 : index
    %138 = vector.load %arg8[%c0_31, %c0_32] : memref<1x64xf32, #tpu.memory_space<vmem>>, vector<1x64xf32>
    %139 = vector.broadcast %138 : vector<1x64xf32> to vector<8x64xf32>
    %140 = arith.addf %137, %139 : vector<8x64xf32>
    %141 = arith.addf %69, %140 : vector<8x64xf32>
    %c0_33 = arith.constant 0 : index
    %c0_34 = arith.constant 0 : index
    %142 = vector.load %arg9[%c0_33, %c0_34] : memref<1x64xf32, #tpu.memory_space<vmem>>, vector<1x64xf32>
    %c0_35 = arith.constant 0 : index
    %c0_36 = arith.constant 0 : index
    %143 = vector.load %arg10[%c0_35, %c0_36] : memref<1x64xf32, #tpu.memory_space<vmem>>, vector<1x64xf32>
    %cst_37 = arith.constant dense<0.000000e+00> : vector<8xf32>
    %144 = vector.multi_reduction <add>, %141, %cst_37 [1] : vector<8x64xf32> to vector<8xf32>
    %145 = vector.shape_cast %144 : vector<8xf32> to vector<8x1xf32>
    %cst_38 = arith.constant 6.400000e+01 : f32
    %146 = vector.broadcast %cst_38 : f32 to vector<8x1xf32>
    %147 = arith.divf %145, %146 : vector<8x1xf32>
    %148 = vector.broadcast %147 : vector<8x1xf32> to vector<8x64xf32>
    %149 = arith.subf %141, %148 : vector<8x64xf32>
    %150 = arith.mulf %149, %149 : vector<8x64xf32>
    %cst_39 = arith.constant dense<0.000000e+00> : vector<8xf32>
    %151 = vector.multi_reduction <add>, %150, %cst_39 [1] : vector<8x64xf32> to vector<8xf32>
    %152 = vector.shape_cast %151 : vector<8xf32> to vector<8x1xf32>
    %cst_40 = arith.constant 6.400000e+01 : f32
    %153 = vector.broadcast %cst_40 : f32 to vector<8x1xf32>
    %154 = arith.divf %152, %153 : vector<8x1xf32>
    %155 = vector.broadcast %147 : vector<8x1xf32> to vector<8x64xf32>
    %156 = arith.subf %141, %155 : vector<8x64xf32>
    %cst_41 = arith.constant 9.99999974E-6 : f32
    %157 = vector.broadcast %cst_41 : f32 to vector<8x1xf32>
    %158 = arith.addf %154, %157 : vector<8x1xf32>
    %159 = math.rsqrt %158 : vector<8x1xf32>
    %160 = vector.broadcast %159 : vector<8x1xf32> to vector<8x64xf32>
    %161 = arith.mulf %156, %160 : vector<8x64xf32>
    %162 = vector.broadcast %142 : vector<1x64xf32> to vector<8x64xf32>
    %163 = arith.mulf %161, %162 : vector<8x64xf32>
    %164 = vector.broadcast %143 : vector<1x64xf32> to vector<8x64xf32>
    %165 = arith.addf %163, %164 : vector<8x64xf32>
    %166 = arith.truncf %165 : vector<8x64xf32> to vector<8x64xbf16>
    %c0_42 = arith.constant 0 : index
    %c0_43 = arith.constant 0 : index
    %167 = vector.load %arg11[%c0_42, %c0_43] : memref<64x256xbf16, #tpu.memory_space<vmem>>, vector<64x256xbf16>
    %cst_44 = arith.constant dense<0.000000e+00> : vector<8x256xf32>
    %168 = tpu.matmul %166, %167, %cst_44 {dimension_numbers = #tpu.dot_dimension_numbers<[1], [0], [0], [1], [0, 0, 1, 1], [], []>} : vector<8x64xbf16>, vector<64x256xbf16>, vector<8x256xf32> -> vector<8x256xf32>
    %c0_45 = arith.constant 0 : index
    %c0_46 = arith.constant 0 : index
    %169 = vector.load %arg12[%c0_45, %c0_46] : memref<1x256xf32, #tpu.memory_space<vmem>>, vector<1x256xf32>
    %170 = vector.broadcast %169 : vector<1x256xf32> to vector<8x256xf32>
    %171 = arith.addf %168, %170 : vector<8x256xf32>
    %cst_47 = arith.constant 0.000000e+00 : f32
    %172 = vector.broadcast %cst_47 : f32 to vector<8x256xf32>
    %173 = arith.maximumf %171, %172 : vector<8x256xf32>
    %174 = arith.truncf %173 : vector<8x256xf32> to vector<8x256xbf16>
    %c0_48 = arith.constant 0 : index
    %c0_49 = arith.constant 0 : index
    %175 = vector.load %arg13[%c0_48, %c0_49] : memref<256x64xbf16, #tpu.memory_space<vmem>>, vector<256x64xbf16>
    %cst_50 = arith.constant dense<0.000000e+00> : vector<8x64xf32>
    %176 = tpu.matmul %174, %175, %cst_50 {dimension_numbers = #tpu.dot_dimension_numbers<[1], [0], [0], [1], [0, 0, 1, 1], [], []>} : vector<8x256xbf16>, vector<256x64xbf16>, vector<8x64xf32> -> vector<8x64xf32>
    %c0_51 = arith.constant 0 : index
    %c0_52 = arith.constant 0 : index
    %177 = vector.load %arg14[%c0_51, %c0_52] : memref<1x64xf32, #tpu.memory_space<vmem>>, vector<1x64xf32>
    %178 = vector.broadcast %177 : vector<1x64xf32> to vector<8x64xf32>
    %179 = arith.addf %176, %178 : vector<8x64xf32>
    %180 = arith.addf %165, %179 : vector<8x64xf32>
    %c0_53 = arith.constant 0 : index
    %c0_54 = arith.constant 0 : index
    %181 = vector.load %arg15[%c0_53, %c0_54] : memref<1x64xf32, #tpu.memory_space<vmem>>, vector<1x64xf32>
    %c0_55 = arith.constant 0 : index
    %c0_56 = arith.constant 0 : index
    %182 = vector.load %arg16[%c0_55, %c0_56] : memref<1x64xf32, #tpu.memory_space<vmem>>, vector<1x64xf32>
    %cst_57 = arith.constant dense<0.000000e+00> : vector<8xf32>
    %183 = vector.multi_reduction <add>, %180, %cst_57 [1] : vector<8x64xf32> to vector<8xf32>
    %184 = vector.shape_cast %183 : vector<8xf32> to vector<8x1xf32>
    %cst_58 = arith.constant 6.400000e+01 : f32
    %185 = vector.broadcast %cst_58 : f32 to vector<8x1xf32>
    %186 = arith.divf %184, %185 : vector<8x1xf32>
    %187 = vector.broadcast %186 : vector<8x1xf32> to vector<8x64xf32>
    %188 = arith.subf %180, %187 : vector<8x64xf32>
    %189 = arith.mulf %188, %188 : vector<8x64xf32>
    %cst_59 = arith.constant dense<0.000000e+00> : vector<8xf32>
    %190 = vector.multi_reduction <add>, %189, %cst_59 [1] : vector<8x64xf32> to vector<8xf32>
    %191 = vector.shape_cast %190 : vector<8xf32> to vector<8x1xf32>
    %cst_60 = arith.constant 6.400000e+01 : f32
    %192 = vector.broadcast %cst_60 : f32 to vector<8x1xf32>
    %193 = arith.divf %191, %192 : vector<8x1xf32>
    %194 = vector.broadcast %186 : vector<8x1xf32> to vector<8x64xf32>
    %195 = arith.subf %180, %194 : vector<8x64xf32>
    %cst_61 = arith.constant 9.99999974E-6 : f32
    %196 = vector.broadcast %cst_61 : f32 to vector<8x1xf32>
    %197 = arith.addf %193, %196 : vector<8x1xf32>
    %198 = math.rsqrt %197 : vector<8x1xf32>
    %199 = vector.broadcast %198 : vector<8x1xf32> to vector<8x64xf32>
    %200 = arith.mulf %195, %199 : vector<8x64xf32>
    %201 = vector.broadcast %181 : vector<1x64xf32> to vector<8x64xf32>
    %202 = arith.mulf %200, %201 : vector<8x64xf32>
    %203 = vector.broadcast %182 : vector<1x64xf32> to vector<8x64xf32>
    %204 = arith.addf %202, %203 : vector<8x64xf32>
    %205 = arith.truncf %204 : vector<8x64xf32> to vector<8x64xbf16>
    %c0_62 = arith.constant 0 : index
    %c0_63 = arith.constant 0 : index
    %206 = vector.load %arg17[%c0_62, %c0_63] : memref<64x128xbf16, #tpu.memory_space<vmem>>, vector<64x128xbf16>
    %cst_64 = arith.constant dense<0.000000e+00> : vector<8x128xf32>
    %207 = tpu.matmul %205, %206, %cst_64 {dimension_numbers = #tpu.dot_dimension_numbers<[1], [0], [0], [1], [0, 0, 1, 1], [], []>} : vector<8x64xbf16>, vector<64x128xbf16>, vector<8x128xf32> -> vector<8x128xf32>
    %c0_65 = arith.constant 0 : index
    %c0_66 = arith.constant 0 : index
    %208 = vector.load %arg18[%c0_65, %c0_66] : memref<1x128xf32, #tpu.memory_space<vmem>>, vector<1x128xf32>
    %209 = vector.broadcast %208 : vector<1x128xf32> to vector<8x128xf32>
    %210 = arith.addf %207, %209 : vector<8x128xf32>
    %c0_67 = arith.constant 0 : index
    %c0_68 = arith.constant 0 : index
    %211 = vector.load %arg19[%c0_67, %c0_68] : memref<8x128xf32, #tpu.memory_space<vmem>>, vector<8x128xf32>
    tpu.vector_store %arg19[%c0_67, %c0_68], %210 {strides = array<i32>} : memref<8x128xf32, #tpu.memory_space<vmem>>, vector<8x128xf32>,
    return
  }
  func.func @transform_0(%arg0: i32) -> (i32, i32) {
    %c0_i32 = arith.constant 0 : i32
    %c0_i32_0 = arith.constant 0 : i32
    return %arg0, %c0_i32 : i32, i32
  }
  func.func @transform_1(%arg0: i32) -> (i32, i32) {
    %c0_i32 = arith.constant 0 : i32
    %c0_i32_0 = arith.constant 0 : i32
    %c0_i32_1 = arith.constant 0 : i32
    return %c0_i32, %c0_i32_0 : i32, i32
  }
  func.func @transform_2(%arg0: i32) -> (i32, i32) {
    %c0_i32 = arith.constant 0 : i32
    %c0_i32_0 = arith.constant 0 : i32
    %c0_i32_1 = arith.constant 0 : i32
    return %c0_i32, %c0_i32_0 : i32, i32
  }
  func.func @transform_3(%arg0: i32) -> (i32, i32) {
    %c0_i32 = arith.constant 0 : i32
    %c0_i32_0 = arith.constant 0 : i32
    %c0_i32_1 = arith.constant 0 : i32
    return %c0_i32, %c0_i32_0 : i32, i32
  }
  func.func @transform_4(%arg0: i32) -> (i32, i32) {
    %c0_i32 = arith.constant 0 : i32
    %c0_i32_0 = arith.constant 0 : i32
    %c0_i32_1 = arith.constant 0 : i32
    return %c0_i32, %c0_i32_0 : i32, i32
  }
  func.func @transform_5(%arg0: i32) -> (i32, i32) {
    %c0_i32 = arith.constant 0 : i32
    %c0_i32_0 = arith.constant 0 : i32
    %c0_i32_1 = arith.constant 0 : i32
    return %c0_i32, %c0_i32_0 : i32, i32
  }
  func.func @transform_6(%arg0: i32) -> (i32, i32) {
    %c0_i32 = arith.constant 0 : i32
    %c0_i32_0 = arith.constant 0 : i32
    %c0_i32_1 = arith.constant 0 : i32
    return %c0_i32, %c0_i32_0 : i32, i32
  }
  func.func @transform_7(%arg0: i32) -> (i32, i32) {
    %c0_i32 = arith.constant 0 : i32
    %c0_i32_0 = arith.constant 0 : i32
    %c0_i32_1 = arith.constant 0 : i32
    return %c0_i32, %c0_i32_0 : i32, i32
  }
  func.func @transform_8(%arg0: i32) -> (i32, i32) {
    %c0_i32 = arith.constant 0 : i32
    %c0_i32_0 = arith.constant 0 : i32
    %c0_i32_1 = arith.constant 0 : i32
    return %c0_i32, %c0_i32_0 : i32, i32
  }
  func.func @transform_9(%arg0: i32) -> (i32, i32) {
    %c0_i32 = arith.constant 0 : i32
    %c0_i32_0 = arith.constant 0 : i32
    %c0_i32_1 = arith.constant 0 : i32
    return %c0_i32, %c0_i32_0 : i32, i32
  }
  func.func @transform_10(%arg0: i32) -> (i32, i32) {
    %c0_i32 = arith.constant 0 : i32
    %c0_i32_0 = arith.constant 0 : i32
    %c0_i32_1 = arith.constant 0 : i32
    return %c0_i32, %c0_i32_0 : i32, i32
  }
  func.func @transform_11(%arg0: i32) -> (i32, i32) {
    %c0_i32 = arith.constant 0 : i32
    %c0_i32_0 = arith.constant 0 : i32
    %c0_i32_1 = arith.constant 0 : i32
    return %c0_i32, %c0_i32_0 : i32, i32
  }
  func.func @transform_12(%arg0: i32) -> (i32, i32) {
    %c0_i32 = arith.constant 0 : i32
    %c0_i32_0 = arith.constant 0 : i32
    %c0_i32_1 = arith.constant 0 : i32
    return %c0_i32, %c0_i32_0 : i32, i32
  }
  func.func @transform_13(%arg0: i32) -> (i32, i32) {
    %c0_i32 = arith.constant 0 : i32
    %c0_i32_0 = arith.constant 0 : i32
    %c0_i32_1 = arith.constant 0 : i32
    return %c0_i32, %c0_i32_0 : i32, i32
  }
  func.func @transform_14(%arg0: i32) -> (i32, i32) {
    %c0_i32 = arith.constant 0 : i32
    %c0_i32_0 = arith.constant 0 : i32
    %c0_i32_1 = arith.constant 0 : i32
    return %c0_i32, %c0_i32_0 : i32, i32
  }
  func.func @transform_15(%arg0: i32) -> (i32, i32) {
    %c0_i32 = arith.constant 0 : i32
    %c0_i32_0 = arith.constant 0 : i32
    %c0_i32_1 = arith.constant 0 : i32
    return %c0_i32, %c0_i32_0 : i32, i32
  }
  func.func @transform_16(%arg0: i32) -> (i32, i32) {
    %c0_i32 = arith.constant 0 : i32
    %c0_i32_0 = arith.constant 0 : i32
    %c0_i32_1 = arith.constant 0 : i32
    return %c0_i32, %c0_i32_0 : i32, i32
  }
  func.func @transform_17(%arg0: i32) -> (i32, i32) {
    %c0_i32 = arith.constant 0 : i32
    %c0_i32_0 = arith.constant 0 : i32
    %c0_i32_1 = arith.constant 0 : i32
    return %c0_i32, %c0_i32_0 : i32, i32
  }
  func.func @transform_18(%arg0: i32) -> (i32, i32) {
    %c0_i32 = arith.constant 0 : i32
    %c0_i32_0 = arith.constant 0 : i32
    return %arg0, %c0_i32 : i32, i32
  }
}

</mosaic_0001>

<llo_original>
// kernel: transformer_forward.1
$region0: #{transformer_forward.1}
  #allocation0 [shape = 'u32[]', space=smem, size = 0x4, offset = 0x4, fixed_abs, tag = 'smem constant byte address 0x4 - core index']
  #allocation1 [shape = 'u32[144,128]{1,0:T(1,128)}', space=vmem, size = 0x12000, scoped, tag = 'internal scratch']
  %s0 = inlined_call_operand.vmem [shape: s32[16,8], index: 0, kind: input, shape index: {}]
  %s1 = inlined_call_operand.vmem [shape: f32[4,64], index: 1, kind: input, shape index: {}]
  %s2 = inlined_call_operand.vmem [shape: bf16[64,64], index: 2, kind: input, shape index: {}]
  %s3 = inlined_call_operand.vmem [shape: f32[1,64], index: 3, kind: input, shape index: {}]
  %s4 = inlined_call_operand.vmem [shape: bf16[64,128], index: 4, kind: input, shape index: {}]
  %s5 = inlined_call_operand.vmem [shape: f32[1,128], index: 5, kind: input, shape index: {}]
  %s6 = inlined_call_operand.vmem [shape: bf16[64,64], index: 6, kind: input, shape index: {}]
  %s7 = inlined_call_operand.vmem [shape: f32[1,64], index: 7, kind: input, shape index: {}]
  %s8 = inlined_call_operand.vmem [shape: f32[1,64], index: 8, kind: input, shape index: {}]
  %s9 = inlined_call_operand.vmem [shape: f32[1,64], index: 9, kind: input, shape index: {}]
  %s10 = inlined_call_operand.vmem [shape: bf16[64,256], index: 10, kind: input, shape index: {}]
  %s11 = inlined_call_operand.vmem [shape: f32[1,256], index: 11, kind: input, shape index: {}]
  %s12 = inlined_call_operand.vmem [shape: bf16[256,64], index: 12, kind: input, shape index: {}]
  %s13 = inlined_call_operand.vmem [shape: f32[1,64], index: 13, kind: input, shape index: {}]
  %s14 = inlined_call_operand.vmem [shape: f32[1,64], index: 14, kind: input, shape index: {}]
  %s15 = inlined_call_operand.vmem [shape: f32[1,64], index: 15, kind: input, shape index: {}]
  %s16 = inlined_call_operand.vmem [shape: bf16[64,128], index: 16, kind: input, shape index: {}]
  %s17 = inlined_call_operand.vmem [shape: f32[1,128], index: 17, kind: input, shape index: {}]
  %s18 = inlined_call_operand.vmem [shape: f32[16,128], index: 18, kind: output, shape index: {}]
  %s19 = sld [smem:[#allocation0]]
  $region105: #{transformer_forward.1} parent=0
    _
  %s21 = ssub.s32 1, %s19
  %s22 = scalar_select 0, %s21, %s19
  loop: start=0, step=1, limit=4
  $region2: #{transformer_forward.1} parent=0 // loop_pre_header
    _
  $region3: #{transformer_forward.1} parent=0 // loop_header
    %s24 = sphi 0, %s28
    %p25 = scmp.ge.s32.totalorder %s24, 4
    %s34 = sphi 0, %s36
    %s37 = sphi 0, %s34
    %s38 = sphi 0, %s37
    %s54 = sphi 0, %s38
    %s58 = sphi 0, %s58
    %s60 = sphi 0, %s58
    %s61 = sphi 0, %s60
    %s75 = sphi 0, %s61
    %s79 = sphi 0, %s79
    %s81 = sphi 0, %s79
    %s82 = sphi 0, %s81
    %s96 = sphi 0, %s82
    %s100 = sphi 0, %s100
    %s102 = sphi 0, %s100
    %s103 = sphi 0, %s102
    %s117 = sphi 0, %s103
    %s121 = sphi 0, %s121
    %s123 = sphi 0, %s121
    %s124 = sphi 0, %s123
    %s138 = sphi 0, %s124
    %s142 = sphi 0, %s142
    %s144 = sphi 0, %s142
    %s145 = sphi 0, %s144
    %s159 = sphi 0, %s145
    %s163 = sphi 0, %s163
    %s165 = sphi 0, %s163
    %s166 = sphi 0, %s165
    %s180 = sphi 0, %s166
    %s184 = sphi 0, %s184
    %s186 = sphi 0, %s184
    %s187 = sphi 0, %s186
    %s201 = sphi 0, %s187
    %s205 = sphi 0, %s205
    %s207 = sphi 0, %s205
    %s208 = sphi 0, %s207
    %s222 = sphi 0, %s208
    %s226 = sphi 0, %s226
    %s228 = sphi 0, %s226
    %s229 = sphi 0, %s228
    %s243 = sphi 0, %s229
    %s247 = sphi 0, %s247
    %s249 = sphi 0, %s247
    %s250 = sphi 0, %s249
    %s264 = sphi 0, %s250
    %s268 = sphi 0, %s268
    %s270 = sphi 0, %s268
    %s271 = sphi 0, %s270
    %s285 = sphi 0, %s271
    %s289 = sphi 0, %s289
    %s291 = sphi 0, %s289
    %s292 = sphi 0, %s291
    %s306 = sphi 0, %s292
    %s310 = sphi 0, %s310
    %s312 = sphi 0, %s310
    %s313 = sphi 0, %s312
    %s327 = sphi 0, %s313
    %s331 = sphi 0, %s331
    %s333 = sphi 0, %s331
    %s334 = sphi 0, %s333
    %s348 = sphi 0, %s334
    %s352 = sphi 0, %s352
    %s354 = sphi 0, %s352
    %s355 = sphi 0, %s354
    %s369 = sphi 0, %s355
    %s373 = sphi 0, %s373
    %s375 = sphi 0, %s373
    %s376 = sphi 0, %s375
    %s390 = sphi 0, %s376
    %s394 = sphi 0, %s394
    %s396 = sphi 0, %s394
    %s397 = sphi 0, %s396
    %s411 = sphi 0, %s397
    %s417 = sphi 0, %s419
    %s420 = sphi 0, %s417
    %s421 = sphi 0, %s420
    %s437 = sphi 0, %s421
  $region4: #{transformer_forward.1} parent=0 // loop_header_branch
    %27 = sbr.rel (%p25) target = $region8
  $region5: #{transformer_forward.1} parent=0 // loop_body
    %s29 = ssub.s32 %s24, 1
    %s30 = ssub.s32 %s24, 2
    %s31 = sadd.s32 %s24, 1
    %s32 = ssub.s32 %s24, %s31
    %p33 = scmp.eq.s32.totalorder %s32, 0
    %s35 = sadd.s32 %s34, 1
    %s36 = scalar_select %p33, %s34, %s35
    %p39 = pneg %p33
    %p40 = scmp.eq.s32.totalorder %s24, 1
    %p41 = por %p39, %p40
    %p42 = scmp.ne.s32.totalorder %s34, %s37
    %p43 = scmp.eq.s32.totalorder %s24, 0
    %p44 = por %p42, %p43
    %p45 = scmp.ne.s32.totalorder %s34, %s37
    %p46 = scmp.eq.s32.totalorder %s29, 1
    %p47 = por %p45, %p46
    %p48 = scmp.ne.s32.totalorder %s37, %s38
    %p49 = scmp.eq.s32.totalorder %s29, 0
    %p50 = por %p48, %p49
    %p51 = scmp.ne.s32.totalorder %s37, %s38
    %p52 = scmp.eq.s32.totalorder %s30, 1
    %p53 = por %p51, %p52
    %p55 = scmp.ne.s32.totalorder %s38, %s54
    %p56 = scmp.eq.s32.totalorder %s30, 0
    %p57 = por %p55, %p56
    %s59 = sadd.s32 %s58, 1
    %p62 = scmp.eq.s32.totalorder %s24, 1
    %p63 = scmp.ne.s32.totalorder %s58, %s60
    %p64 = scmp.eq.s32.totalorder %s24, 0
    %p65 = por %p63, %p64
    %p66 = scmp.ne.s32.totalorder %s58, %s60
    %p67 = scmp.eq.s32.totalorder %s29, 1
    %p68 = por %p66, %p67
    %p69 = scmp.ne.s32.totalorder %s60, %s61
    %p70 = scmp.eq.s32.totalorder %s29, 0
    %p71 = por %p69, %p70
    %p72 = scmp.ne.s32.totalorder %s60, %s61
    %p73 = scmp.eq.s32.totalorder %s30, 1
    %p74 = por %p72, %p73
    %p76 = scmp.ne.s32.totalorder %s61, %s75
    %p77 = scmp.eq.s32.totalorder %s30, 0
    %p78 = por %p76, %p77
    %s80 = sadd.s32 %s79, 1
    %p83 = scmp.eq.s32.totalorder %s24, 1
    %p84 = scmp.ne.s32.totalorder %s79, %s81
    %p85 = scmp.eq.s32.totalorder %s24, 0
    %p86 = por %p84, %p85
    %p87 = scmp.ne.s32.totalorder %s79, %s81
    %p88 = scmp.eq.s32.totalorder %s29, 1
    %p89 = por %p87, %p88
    %p90 = scmp.ne.s32.totalorder %s81, %s82
    %p91 = scmp.eq.s32.totalorder %s29, 0
    %p92 = por %p90, %p91
    %p93 = scmp.ne.s32.totalorder %s81, %s82
    %p94 = scmp.eq.s32.totalorder %s30, 1
    %p95 = por %p93, %p94
    %p97 = scmp.ne.s32.totalorder %s82, %s96
    %p98 = scmp.eq.s32.totalorder %s30, 0
    %p99 = por %p97, %p98
    %s101 = sadd.s32 %s100, 1
    %p104 = scmp.eq.s32.totalorder %s24, 1
    %p105 = scmp.ne.s32.totalorder %s100, %s102
    %p106 = scmp.eq.s32.totalorder %s24, 0
    %p107 = por %p105, %p106
    %p108 = scmp.ne.s32.totalorder %s100, %s102
    %p109 = scmp.eq.s32.totalorder %s29, 1
    %p110 = por %p108, %p109
    %p111 = scmp.ne.s32.totalorder %s102, %s103
    %p112 = scmp.eq.s32.totalorder %s29, 0
    %p113 = por %p111, %p112
    %p114 = scmp.ne.s32.totalorder %s102, %s103
    %p115 = scmp.eq.s32.totalorder %s30, 1
    %p116 = por %p114, %p115
    %p118 = scmp.ne.s32.totalorder %s103, %s117
    %p119 = scmp.eq.s32.totalorder %s30, 0
    %p120 = por %p118, %p119
    %s122 = sadd.s32 %s121, 1
    %p125 = scmp.eq.s32.totalorder %s24, 1
    %p126 = scmp.ne.s32.totalorder %s121, %s123
    %p127 = scmp.eq.s32.totalorder %s24, 0
    %p128 = por %p126, %p127
    %p129 = scmp.ne.s32.totalorder %s121, %s123
    %p130 = scmp.eq.s32.totalorder %s29, 1
    %p131 = por %p129, %p130
    %p132 = scmp.ne.s32.totalorder %s123, %s124
    %p133 = scmp.eq.s32.totalorder %s29, 0
    %p134 = por %p132, %p133
    %p135 = scmp.ne.s32.totalorder %s123, %s124
    %p136 = scmp.eq.s32.totalorder %s30, 1
    %p137 = por %p135, %p136
    %p139 = scmp.ne.s32.totalorder %s124, %s138
    %p140 = scmp.eq.s32.totalorder %s30, 0
    %p141 = por %p139, %p140
    %s143 = sadd.s32 %s142, 1
    %p146 = scmp.eq.s32.totalorder %s24, 1
    %p147 = scmp.ne.s32.totalorder %s142, %s144
    %p148 = scmp.eq.s32.totalorder %s24, 0
    %p149 = por %p147, %p148
    %p150 = scmp.ne.s32.totalorder %s142, %s144
    %p151 = scmp.eq.s32.totalorder %s29, 1
    %p152 = por %p150, %p151
    %p153 = scmp.ne.s32.totalorder %s144, %s145
    %p154 = scmp.eq.s32.totalorder %s29, 0
    %p155 = por %p153, %p154
    %p156 = scmp.ne.s32.totalorder %s144, %s145
    %p157 = scmp.eq.s32.totalorder %s30, 1
    %p158 = por %p156, %p157
    %p160 = scmp.ne.s32.totalorder %s145, %s159
    %p161 = scmp.eq.s32.totalorder %s30, 0
    %p162 = por %p160, %p161
    %s164 = sadd.s32 %s163, 1
    %p167 = scmp.eq.s32.totalorder %s24, 1
    %p168 = scmp.ne.s32.totalorder %s163, %s165
    %p169 = scmp.eq.s32.totalorder %s24, 0
    %p170 = por %p168, %p169
    %p171 = scmp.ne.s32.totalorder %s163, %s165
    %p172 = scmp.eq.s32.totalorder %s29, 1
    %p173 = por %p171, %p172
    %p174 = scmp.ne.s32.totalorder %s165, %s166
    %p175 = scmp.eq.s32.totalorder %s29, 0
    %p176 = por %p174, %p175
    %p177 = scmp.ne.s32.totalorder %s165, %s166
    %p178 = scmp.eq.s32.totalorder %s30, 1
    %p179 = por %p177, %p178
    %p181 = scmp.ne.s32.totalorder %s166, %s180
    %p182 = scmp.eq.s32.totalorder %s30, 0
    %p183 = por %p181, %p182
    %s185 = sadd.s32 %s184, 1
    %p188 = scmp.eq.s32.totalorder %s24, 1
    %p189 = scmp.ne.s32.totalorder %s184, %s186
    %p190 = scmp.eq.s32.totalorder %s24, 0
    %p191 = por %p189, %p190
    %p192 = scmp.ne.s32.totalorder %s184, %s186
    %p193 = scmp.eq.s32.totalorder %s29, 1
    %p194 = por %p192, %p193
    %p195 = scmp.ne.s32.totalorder %s186, %s187
    %p196 = scmp.eq.s32.totalorder %s29, 0
    %p197 = por %p195, %p196
    %p198 = scmp.ne.s32.totalorder %s186, %s187
    %p199 = scmp.eq.s32.totalorder %s30, 1
    %p200 = por %p198, %p199
    %p202 = scmp.ne.s32.totalorder %s187, %s201
    %p203 = scmp.eq.s32.totalorder %s30, 0
    %p204 = por %p202, %p203
    %s206 = sadd.s32 %s205, 1
    %p209 = scmp.eq.s32.totalorder %s24, 1
    %p210 = scmp.ne.s32.totalorder %s205, %s207
    %p211 = scmp.eq.s32.totalorder %s24, 0
    %p212 = por %p210, %p211
    %p213 = scmp.ne.s32.totalorder %s205, %s207
    %p214 = scmp.eq.s32.totalorder %s29, 1
    %p215 = por %p213, %p214
    %p216 = scmp.ne.s32.totalorder %s207, %s208
    %p217 = scmp.eq.s32.totalorder %s29, 0
    %p218 = por %p216, %p217
    %p219 = scmp.ne.s32.totalorder %s207, %s208
    %p220 = scmp.eq.s32.totalorder %s30, 1
    %p221 = por %p219, %p220
    %p223 = scmp.ne.s32.totalorder %s208, %s222
    %p224 = scmp.eq.s32.totalorder %s30, 0
    %p225 = por %p223, %p224
    %s227 = sadd.s32 %s226, 1
    %p230 = scmp.eq.s32.totalorder %s24, 1
    %p231 = scmp.ne.s32.totalorder %s226, %s228
    %p232 = scmp.eq.s32.totalorder %s24, 0
    %p233 = por %p231, %p232
    %p234 = scmp.ne.s32.totalorder %s226, %s228
    %p235 = scmp.eq.s32.totalorder %s29, 1
    %p236 = por %p234, %p235
    %p237 = scmp.ne.s32.totalorder %s228, %s229
    %p238 = scmp.eq.s32.totalorder %s29, 0
    %p239 = por %p237, %p238
    %p240 = scmp.ne.s32.totalorder %s228, %s229
    %p241 = scmp.eq.s32.totalorder %s30, 1
    %p242 = por %p240, %p241
    %p244 = scmp.ne.s32.totalorder %s229, %s243
    %p245 = scmp.eq.s32.totalorder %s30, 0
    %p246 = por %p244, %p245
    %s248 = sadd.s32 %s247, 1
    %p251 = scmp.eq.s32.totalorder %s24, 1
    %p252 = scmp.ne.s32.totalorder %s247, %s249
    %p253 = scmp.eq.s32.totalorder %s24, 0
    %p254 = por %p252, %p253
    %p255 = scmp.ne.s32.totalorder %s247, %s249
    %p256 = scmp.eq.s32.totalorder %s29, 1
    %p257 = por %p255, %p256
    %p258 = scmp.ne.s32.totalorder %s249, %s250
    %p259 = scmp.eq.s32.totalorder %s29, 0
    %p260 = por %p258, %p259
    %p261 = scmp.ne.s32.totalorder %s249, %s250
    %p262 = scmp.eq.s32.totalorder %s30, 1
    %p263 = por %p261, %p262
    %p265 = scmp.ne.s32.totalorder %s250, %s264
    %p266 = scmp.eq.s32.totalorder %s30, 0
    %p267 = por %p265, %p266
    %s269 = sadd.s32 %s268, 1
    %p272 = scmp.eq.s32.totalorder %s24, 1
    %p273 = scmp.ne.s32.totalorder %s268, %s270
    %p274 = scmp.eq.s32.totalorder %s24, 0
    %p275 = por %p273, %p274
    %p276 = scmp.ne.s32.totalorder %s268, %s270
    %p277 = scmp.eq.s32.totalorder %s29, 1
    %p278 = por %p276, %p277
    %p279 = scmp.ne.s32.totalorder %s270, %s271
    %p280 = scmp.eq.s32.totalorder %s29, 0
    %p281 = por %p279, %p280
    %p282 = scmp.ne.s32.totalorder %s270, %s271
    %p283 = scmp.eq.s32.totalorder %s30, 1
    %p284 = por %p282, %p283
    %p286 = scmp.ne.s32.totalorder %s271, %s285
    %p287 = scmp.eq.s32.totalorder %s30, 0
    %p288 = por %p286, %p287
    %s290 = sadd.s32 %s289, 1
    %p293 = scmp.eq.s32.totalorder %s24, 1
    %p294 = scmp.ne.s32.totalorder %s289, %s291
    %p295 = scmp.eq.s32.totalorder %s24, 0
    %p296 = por %p294, %p295
    %p297 = scmp.ne.s32.totalorder %s289, %s291
    %p298 = scmp.eq.s32.totalorder %s29, 1
    %p299 = por %p297, %p298
    %p300 = scmp.ne.s32.totalorder %s291, %s292
    %p301 = scmp.eq.s32.totalorder %s29, 0
    %p302 = por %p300, %p301
    %p303 = scmp.ne.s32.totalorder %s291, %s292
    %p304 = scmp.eq.s32.totalorder %s30, 1
    %p305 = por %p303, %p304
    %p307 = scmp.ne.s32.totalorder %s292, %s306
    %p308 = scmp.eq.s32.totalorder %s30, 0
    %p309 = por %p307, %p308
    %s311 = sadd.s32 %s310, 1
    %p314 = scmp.eq.s32.totalorder %s24, 1
    %p315 = scmp.ne.s32.totalorder %s310, %s312
    %p316 = scmp.eq.s32.totalorder %s24, 0
    %p317 = por %p315, %p316
    %p318 = scmp.ne.s32.totalorder %s310, %s312
    %p319 = scmp.eq.s32.totalorder %s29, 1
    %p320 = por %p318, %p319
    %p321 = scmp.ne.s32.totalorder %s312, %s313
    %p322 = scmp.eq.s32.totalorder %s29, 0
    %p323 = por %p321, %p322
    %p324 = scmp.ne.s32.totalorder %s312, %s313
    %p325 = scmp.eq.s32.totalorder %s30, 1
    %p326 = por %p324, %p325
    %p328 = scmp.ne.s32.totalorder %s313, %s327
    %p329 = scmp.eq.s32.totalorder %s30, 0
    %p330 = por %p328, %p329
    %s332 = sadd.s32 %s331, 1
    %p335 = scmp.eq.s32.totalorder %s24, 1
    %p336 = scmp.ne.s32.totalorder %s331, %s333
    %p337 = scmp.eq.s32.totalorder %s24, 0
    %p338 = por %p336, %p337
    %p339 = scmp.ne.s32.totalorder %s331, %s333
    %p340 = scmp.eq.s32.totalorder %s29, 1
    %p341 = por %p339, %p340
    %p342 = scmp.ne.s32.totalorder %s333, %s334
    %p343 = scmp.eq.s32.totalorder %s29, 0
    %p344 = por %p342, %p343
    %p345 = scmp.ne.s32.totalorder %s333, %s334
    %p346 = scmp.eq.s32.totalorder %s30, 1
    %p347 = por %p345, %p346
    %p349 = scmp.ne.s32.totalorder %s334, %s348
    %p350 = scmp.eq.s32.totalorder %s30, 0
    %p351 = por %p349, %p350
    %s353 = sadd.s32 %s352, 1
    %p356 = scmp.eq.s32.totalorder %s24, 1
    %p357 = scmp.ne.s32.totalorder %s352, %s354
    %p358 = scmp.eq.s32.totalorder %s24, 0
    %p359 = por %p357, %p358
    %p360 = scmp.ne.s32.totalorder %s352, %s354
    %p361 = scmp.eq.s32.totalorder %s29, 1
    %p362 = por %p360, %p361
    %p363 = scmp.ne.s32.totalorder %s354, %s355
    %p364 = scmp.eq.s32.totalorder %s29, 0
    %p365 = por %p363, %p364
    %p366 = scmp.ne.s32.totalorder %s354, %s355
    %p367 = scmp.eq.s32.totalorder %s30, 1
    %p368 = por %p366, %p367
    %p370 = scmp.ne.s32.totalorder %s355, %s369
    %p371 = scmp.eq.s32.totalorder %s30, 0
    %p372 = por %p370, %p371
    %s374 = sadd.s32 %s373, 1
    %p377 = scmp.eq.s32.totalorder %s24, 1
    %p378 = scmp.ne.s32.totalorder %s373, %s375
    %p379 = scmp.eq.s32.totalorder %s24, 0
    %p380 = por %p378, %p379
    %p381 = scmp.ne.s32.totalorder %s373, %s375
    %p382 = scmp.eq.s32.totalorder %s29, 1
    %p383 = por %p381, %p382
    %p384 = scmp.ne.s32.totalorder %s375, %s376
    %p385 = scmp.eq.s32.totalorder %s29, 0
    %p386 = por %p384, %p385
    %p387 = scmp.ne.s32.totalorder %s375, %s376
    %p388 = scmp.eq.s32.totalorder %s30, 1
    %p389 = por %p387, %p388
    %p391 = scmp.ne.s32.totalorder %s376, %s390
    %p392 = scmp.eq.s32.totalorder %s30, 0
    %p393 = por %p391, %p392
    %s395 = sadd.s32 %s394, 1
    %p398 = scmp.eq.s32.totalorder %s24, 1
    %p399 = scmp.ne.s32.totalorder %s394, %s396
    %p400 = scmp.eq.s32.totalorder %s24, 0
    %p401 = por %p399, %p400
    %p402 = scmp.ne.s32.totalorder %s394, %s396
    %p403 = scmp.eq.s32.totalorder %s29, 1
    %p404 = por %p402, %p403
    %p405 = scmp.ne.s32.totalorder %s396, %s397
    %p406 = scmp.eq.s32.totalorder %s29, 0
    %p407 = por %p405, %p406
    %p408 = scmp.ne.s32.totalorder %s396, %s397
    %p409 = scmp.eq.s32.totalorder %s30, 1
    %p410 = por %p408, %p409
    %p412 = scmp.ne.s32.totalorder %s397, %s411
    %p413 = scmp.eq.s32.totalorder %s30, 0
    %p414 = por %p412, %p413
    %s415 = ssub.s32 %s24, %s31
    %p416 = scmp.eq.s32.totalorder %s415, 0
    %s418 = sadd.s32 %s417, 1
    %s419 = scalar_select %p416, %s417, %s418
    %p422 = pneg %p416
    %p423 = scmp.eq.s32.totalorder %s24, 1
    %p424 = por %p422, %p423
    %p425 = scmp.ne.s32.totalorder %s417, %s420
    %p426 = scmp.eq.s32.totalorder %s24, 0
    %p427 = por %p425, %p426
    %p428 = scmp.ne.s32.totalorder %s417, %s420
    %p429 = scmp.eq.s32.totalorder %s29, 1
    %p430 = por %p428, %p429
    %p431 = scmp.ne.s32.totalorder %s420, %s421
    %p432 = scmp.eq.s32.totalorder %s29, 0
    %p433 = por %p431, %p432
    %p434 = scmp.ne.s32.totalorder %s420, %s421
    %p435 = scmp.eq.s32.totalorder %s30, 1
    %p436 = por %p434, %p435
    %p438 = scmp.ne.s32.totalorder %s421, %s437
    %p439 = scmp.eq.s32.totalorder %s30, 0
    %p440 = por %p438, %p439
    %p441 = scmp.le.s32.totalorder 1, %s24
    %p442 = scmp.lt.s32.totalorder %s24, 3
    %p443 = pnand %p441, %p442
    %p444 = pneg %p443
    // Predicated region
    $region9: #{transformer_forward.1} parent=5 // pred_check
      _
    $region10: #{transformer_forward.1} parent=5 // pred_check_branch
      %446 = sbr.rel (%p443) target = $region12
    $region11: #{transformer_forward.1} parent=5 // pred_region
      %s447 = ssub.s32 %s24, 1
      // Predicated region
      $region13: #{transformer_forward.1} parent=11 // pred_check
        %p448 = pneg %p71
      $region14: #{transformer_forward.1} parent=11 // pred_check_branch
        %450 = sbr.rel (%p448) target = $region16
      $region15: #{transformer_forward.1} parent=11 // pred_region
        _
      $region16: #{transformer_forward.1} parent=11 // pred_fallthru
        _
      // Predicated region
      $region17: #{transformer_forward.1} parent=11 // pred_check
        %p451 = pneg %p92
      $region18: #{transformer_forward.1} parent=11 // pred_check_branch
        %453 = sbr.rel (%p451) target = $region20
      $region19: #{transformer_forward.1} parent=11 // pred_region
        _
      $region20: #{transformer_forward.1} parent=11 // pred_fallthru
        _
      // Predicated region
      $region21: #{transformer_forward.1} parent=11 // pred_check
        %p454 = pneg %p113
      $region22: #{transformer_forward.1} parent=11 // pred_check_branch
        %456 = sbr.rel (%p454) target = $region24
      $region23: #{transformer_forward.1} parent=11 // pred_region
        _
      $region24: #{transformer_forward.1} parent=11 // pred_fallthru
        _
      // Predicated region
      $region25: #{transformer_forward.1} parent=11 // pred_check
        %p457 = pneg %p134
      $region26: #{transformer_forward.1} parent=11 // pred_check_branch
        %459 = sbr.rel (%p457) target = $region28
      $region27: #{transformer_forward.1} parent=11 // pred_region
        _
      $region28: #{transformer_forward.1} parent=11 // pred_fallthru
        _
      // Predicated region
      $region29: #{transformer_forward.1} parent=11 // pred_check
        %p460 = pneg %p155
      $region30: #{transformer_forward.1} parent=11 // pred_check_branch
        %462 = sbr.rel (%p460) target = $region32
      $region31: #{transformer_forward.1} parent=11 // pred_region
        _
      $region32: #{transformer_forward.1} parent=11 // pred_fallthru
        _
      // Predicated region
      $region33: #{transformer_forward.1} parent=11 // pred_check
        %p463 = pneg %p176
      $region34: #{transformer_forward.1} parent=11 // pred_check_branch
        %465 = sbr.rel (%p463) target = $region36
      $region35: #{transformer_forward.1} parent=11 // pred_region
        _
      $region36: #{transformer_forward.1} parent=11 // pred_fallthru
        _
      // Predicated region
      $region37: #{transformer_forward.1} parent=11 // pred_check
        %p466 = pneg %p197
      $region38: #{transformer_forward.1} parent=11 // pred_check_branch
        %468 = sbr.rel (%p466) target = $region40
      $region39: #{transformer_forward.1} parent=11 // pred_region
        _
      $region40: #{transformer_forward.1} parent=11 // pred_fallthru
        _
      // Predicated region
      $region41: #{transformer_forward.1} parent=11 // pred_check
        %p469 = pneg %p218
      $region42: #{transformer_forward.1} parent=11 // pred_check_branch
        %471 = sbr.rel (%p469) target = $region44
      $region43: #{transformer_forward.1} parent=11 // pred_region
        _
      $region44: #{transformer_forward.1} parent=11 // pred_fallthru
        _
      // Predicated region
      $region45: #{transformer_forward.1} parent=11 // pred_check
        %p472 = pneg %p239
      $region46: #{transformer_forward.1} parent=11 // pred_check_branch
        %474 = sbr.rel (%p472) target = $region48
      $region47: #{transformer_forward.1} parent=11 // pred_region
        _
      $region48: #{transformer_forward.1} parent=11 // pred_fallthru
        _
      // Predicated region
      $region49: #{transformer_forward.1} parent=11 // pred_check
        %p475 = pneg %p260
      $region50: #{transformer_forward.1} parent=11 // pred_check_branch
        %477 = sbr.rel (%p475) target = $region52
      $region51: #{transformer_forward.1} parent=11 // pred_region
        _
      $region52: #{transformer_forward.1} parent=11 // pred_fallthru
        _
      // Predicated region
      $region53: #{transformer_forward.1} parent=11 // pred_check
        %p478 = pneg %p281
      $region54: #{transformer_forward.1} parent=11 // pred_check_branch
        %480 = sbr.rel (%p478) target = $region56
      $region55: #{transformer_forward.1} parent=11 // pred_region
        _
      $region56: #{transformer_forward.1} parent=11 // pred_fallthru
        _
      // Predicated region
      $region57: #{transformer_forward.1} parent=11 // pred_check
        %p481 = pneg %p302
      $region58: #{transformer_forward.1} parent=11 // pred_check_branch
        %483 = sbr.rel (%p481) target = $region60
      $region59: #{transformer_forward.1} parent=11 // pred_region
        _
      $region60: #{transformer_forward.1} parent=11 // pred_fallthru
        _
      // Predicated region
      $region61: #{transformer_forward.1} parent=11 // pred_check
        %p484 = pneg %p323
      $region62: #{transformer_forward.1} parent=11 // pred_check_branch
        %486 = sbr.rel (%p484) target = $region64
      $region63: #{transformer_forward.1} parent=11 // pred_region
        _
      $region64: #{transformer_forward.1} parent=11 // pred_fallthru
        _
      // Predicated region
      $region65: #{transformer_forward.1} parent=11 // pred_check
        %p487 = pneg %p344
      $region66: #{transformer_forward.1} parent=11 // pred_check_branch
        %489 = sbr.rel (%p487) target = $region68
      $region67: #{transformer_forward.1} parent=11 // pred_region
        _
      $region68: #{transformer_forward.1} parent=11 // pred_fallthru
        _
      // Predicated region
      $region69: #{transformer_forward.1} parent=11 // pred_check
        %p490 = pneg %p365
      $region70: #{transformer_forward.1} parent=11 // pred_check_branch
        %492 = sbr.rel (%p490) target = $region72
      $region71: #{transformer_forward.1} parent=11 // pred_region
        _
      $region72: #{transformer_forward.1} parent=11 // pred_fallthru
        _
      // Predicated region
      $region73: #{transformer_forward.1} parent=11 // pred_check
        %p493 = pneg %p386
      $region74: #{transformer_forward.1} parent=11 // pred_check_branch
        %495 = sbr.rel (%p493) target = $region76
      $region75: #{transformer_forward.1} parent=11 // pred_region
        _
      $region76: #{transformer_forward.1} parent=11 // pred_fallthru
        _
      // Predicated region
      $region77: #{transformer_forward.1} parent=11 // pred_check
        %p496 = pneg %p407
      $region78: #{transformer_forward.1} parent=11 // pred_check_branch
        %498 = sbr.rel (%p496) target = $region80
      $region79: #{transformer_forward.1} parent=11 // pred_region
        _
      $region80: #{transformer_forward.1} parent=11 // pred_fallthru
        _
    $region12: #{transformer_forward.1} parent=5 // pred_fallthru
      _
    %p499 = scmp.lt.s32.totalorder %s24, 2
    // Predicated region
    $region81: #{transformer_forward.1} parent=5 // pred_check
      %p500 = pneg %p499
    $region82: #{transformer_forward.1} parent=5 // pred_check_branch
      %502 = sbr.rel (%p500) target = $region84
    $region83: #{transformer_forward.1} parent=5 // pred_region
      // Predicated region
      $region85: #{transformer_forward.1} parent=83 // pred_check
        %p503 = pneg %p44
      $region86: #{transformer_forward.1} parent=83 // pred_check_branch
        %505 = sbr.rel (%p503) target = $region88
      $region87: #{transformer_forward.1} parent=83 // pred_region
        %p506 = scmp.lt.s32.totalorder %s24, 1
        %s507 = scalar_select %p506, %s24, 1
        %s508 = smul.addr %s507, 8
        %s509 = scalar_lea.vmem %s0, %s508
      $region88: #{transformer_forward.1} parent=83 // pred_fallthru
        _
    $region84: #{transformer_forward.1} parent=5 // pred_fallthru
      _
    %p510 = scmp.le.s32.totalorder 1, %s24
    %p511 = scmp.lt.s32.totalorder %s24, 3
    %p512 = pnand %p510, %p511
    %p513 = pneg %p512
    // Predicated region
    $region89: #{transformer_forward.1} parent=5 // pred_check
      _
    $region90: #{transformer_forward.1} parent=5 // pred_check_branch
      %515 = sbr.rel (%p512) target = $region92
    $region91: #{transformer_forward.1} parent=5 // pred_region
      %s516 = ssub.s32 %s24, 1
      %p517 = scmp.lt.s32.totalorder %s29, 1
      %s518 = scalar_select %p517, %s29, 1
      %s519 = smul.addr %s518, 8
      %s520 = scalar_lea.vmem %s0, %s519
      %p521 = pneg %p50
      %p522 = pneg %p47
      %p523 = pneg %p71
      %p524 = pneg %p68
      %p525 = pneg %p92
      %p526 = pneg %p89
      %p527 = pneg %p113
      %p528 = pneg %p110
      %p529 = pneg %p134
      %p530 = pneg %p131
      %p531 = pneg %p155
      %p532 = pneg %p152
      %p533 = pneg %p176
      %p534 = pneg %p173
      %p535 = pneg %p197
      %p536 = pneg %p194
      %p537 = pneg %p218
      %p538 = pneg %p215
      %p539 = pneg %p239
      %p540 = pneg %p236
      %p541 = pneg %p260
      %p542 = pneg %p257
      %p543 = pneg %p281
      %p544 = pneg %p278
      %p545 = pneg %p302
      %p546 = pneg %p299
      %p547 = pneg %p323
      %p548 = pneg %p320
      %p549 = pneg %p344
      %p550 = pneg %p341
      %p551 = pneg %p365
      %p552 = pneg %p362
      %p553 = pneg %p386
      %p554 = pneg %p383
      %p555 = pneg %p407
      %p556 = pneg %p404
      %p557 = pneg %p433
      %p558 = pneg %p430
      %p559 = scmp.lt.s32.totalorder %s29, 1
      %s560 = scalar_select %p559, %s29, 1
      %s561 = smul.addr %s560, 8
      %s562 = scalar_lea.vmem %s18, %s561
      %p563 = scmp.lt.s32.totalorder %s29, 1
      %s564 = scalar_select %p563, %s29, 1
      %s565 = smul.addr %s564, 8
      %s566 = scalar_lea.vmem %s0, %s565
      %p567 = scmp.lt.s32.totalorder %s29, 1
      %s568 = scalar_select %p567, %s29, 1
      %s569 = smul.addr %s568, 8
      %s570 = scalar_lea.vmem %s18, %s569
      %v572 = vld [vmem:[%s566] sm:$0xff]
      %v573 = vld [vmem:[%s1] sm:$0xf]
      %v574 = vlaneseq
      %v575 = vshrl.u32 %v574, 7
      %v576 = vsub.s32 0, %v575
      %v577 = vrot.slane %v572, %v576
      %579 = vbcast.lane.b32.xlu0 %v577, 256
      %v580 = vpop.permute.xlu0 %579
      %v581 = vlaneseq
      %v582 = vshrl.u32 %v581, 7
      %v583 = vsub.s32 1, %v582
      %v584 = vrot.slane %v572, %v583
      %586 = vbcast.lane.b32.xlu0 %v584, 256
      %v587 = vpop.permute.xlu0 %586
      %v588 = vlaneseq
      %v589 = vshrl.u32 %v588, 7
      %v590 = vsub.s32 2, %v589
      %v591 = vrot.slane %v572, %v590
      %593 = vbcast.lane.b32.xlu0 %v591, 256
      %v594 = vpop.permute.xlu0 %593
      %v595 = vlaneseq
      %v596 = vshrl.u32 %v595, 7
      %v597 = vsub.s32 3, %v596
      %v598 = vrot.slane %v572, %v597
      %600 = vbcast.lane.b32.xlu0 %v598, 256
      %v601 = vpop.permute.xlu0 %600
      %v602 = vlaneseq
      %v603 = vshrl.u32 %v602, 7
      %v604 = vsub.s32 4, %v603
      %v605 = vrot.slane %v572, %v604
      %607 = vbcast.lane.b32.xlu0 %v605, 256
      %v608 = vpop.permute.xlu0 %607
      %v609 = vlaneseq
      %v610 = vshrl.u32 %v609, 7
      %v611 = vsub.s32 5, %v610
      %v612 = vrot.slane %v572, %v611
      %614 = vbcast.lane.b32.xlu0 %v612, 256
      %v615 = vpop.permute.xlu0 %614
      %v616 = vlaneseq
      %v617 = vshrl.u32 %v616, 7
      %v618 = vsub.s32 6, %v617
      %v619 = vrot.slane %v572, %v618
      %621 = vbcast.lane.b32.xlu0 %v619, 256
      %v622 = vpop.permute.xlu0 %621
      %v623 = vlaneseq
      %v624 = vshrl.u32 %v623, 7
      %v625 = vsub.s32 7, %v624
      %v626 = vrot.slane %v572, %v625
      %628 = vbcast.lane.b32.xlu0 %v626, 256
      %v629 = vpop.permute.xlu0 %628
      %vm630 = vcmp.eq.s32.totalorder %v580, 0
      %vm631 = vcmp.eq.s32.totalorder %v587, 0
      %vm632 = vcmp.eq.s32.totalorder %v594, 0
      %vm633 = vcmp.eq.s32.totalorder %v601, 0
      %vm634 = vcmp.eq.s32.totalorder %v608, 0
      %vm635 = vcmp.eq.s32.totalorder %v615, 0
      %vm636 = vcmp.eq.s32.totalorder %v622, 0
      %vm637 = vcmp.eq.s32.totalorder %v629, 0
      %v638 = vsel %vm630, 1, 0
      %v639 = vsel %vm631, 1, 0
      %v640 = vsel %vm632, 1, 0
      %v641 = vsel %vm633, 1, 0
      %v642 = vsel %vm634, 1, 0
      %v643 = vsel %vm635, 1, 0
      %v644 = vsel %vm636, 1, 0
      %v645 = vsel %vm637, 1, 0
      %vm646 = vcmp.eq.s32.totalorder %v638, 1
      %vm647 = vcmp.eq.s32.totalorder %v639, 1
      %vm648 = vcmp.eq.s32.totalorder %v640, 1
      %vm649 = vcmp.eq.s32.totalorder %v641, 1
      %vm650 = vcmp.eq.s32.totalorder %v642, 1
      %vm651 = vcmp.eq.s32.totalorder %v643, 1
      %vm652 = vcmp.eq.s32.totalorder %v644, 1
      %vm653 = vcmp.eq.s32.totalorder %v645, 1
      %v654 = vlaneseq
      %v655 = vshrl.u32 %v654, 7
      %v656 = vsub.s32 0, %v655
      %v657 = vrot.slane %v573, %v656
      %v658 = vsel %vm646, %v657, 0.0
      %v659 = vsel %vm647, %v657, 0.0
      %v660 = vsel %vm648, %v657, 0.0
      %v661 = vsel %vm649, %v657, 0.0
      %v662 = vsel %vm650, %v657, 0.0
      %v663 = vsel %vm651, %v657, 0.0
      %v664 = vsel %vm652, %v657, 0.0
      %v665 = vsel %vm653, %v657, 0.0
      %vm666 = vcmp.eq.s32.totalorder %v580, 1
      %vm667 = vcmp.eq.s32.totalorder %v587, 1
      %vm668 = vcmp.eq.s32.totalorder %v594, 1
      %vm669 = vcmp.eq.s32.totalorder %v601, 1
      %vm670 = vcmp.eq.s32.totalorder %v608, 1
      %vm671 = vcmp.eq.s32.totalorder %v615, 1
      %vm672 = vcmp.eq.s32.totalorder %v622, 1
      %vm673 = vcmp.eq.s32.totalorder %v629, 1
      %v674 = vsel %vm666, 1, 0
      %v675 = vsel %vm667, 1, 0
      %v676 = vsel %vm668, 1, 0
      %v677 = vsel %vm669, 1, 0
      %v678 = vsel %vm670, 1, 0
      %v679 = vsel %vm671, 1, 0
      %v680 = vsel %vm672, 1, 0
      %v681 = vsel %vm673, 1, 0
      %vm682 = vcmp.eq.s32.totalorder %v674, 1
      %vm683 = vcmp.eq.s32.totalorder %v675, 1
      %vm684 = vcmp.eq.s32.totalorder %v676, 1
      %vm685 = vcmp.eq.s32.totalorder %v677, 1
      %vm686 = vcmp.eq.s32.totalorder %v678, 1
      %vm687 = vcmp.eq.s32.totalorder %v679, 1
      %vm688 = vcmp.eq.s32.totalorder %v680, 1
      %vm689 = vcmp.eq.s32.totalorder %v681, 1
      %v690 = vlaneseq
      %v691 = vshrl.u32 %v690, 7
      %v692 = vsub.s32 1, %v691
      %v693 = vrot.slane %v573, %v692
      %v694 = vsel %vm682, %v693, %v658
      %v695 = vsel %vm683, %v693, %v659
      %v696 = vsel %vm684, %v693, %v660
      %v697 = vsel %vm685, %v693, %v661
      %v698 = vsel %vm686, %v693, %v662
      %v699 = vsel %vm687, %v693, %v663
      %v700 = vsel %vm688, %v693, %v664
      %v701 = vsel %vm689, %v693, %v665
      %vm702 = vcmp.eq.s32.totalorder %v580, 2
      %vm703 = vcmp.eq.s32.totalorder %v587, 2
      %vm704 = vcmp.eq.s32.totalorder %v594, 2
      %vm705 = vcmp.eq.s32.totalorder %v601, 2
      %vm706 = vcmp.eq.s32.totalorder %v608, 2
      %vm707 = vcmp.eq.s32.totalorder %v615, 2
      %vm708 = vcmp.eq.s32.totalorder %v622, 2
      %vm709 = vcmp.eq.s32.totalorder %v629, 2
      %v710 = vsel %vm702, 1, 0
      %v711 = vsel %vm703, 1, 0
      %v712 = vsel %vm704, 1, 0
      %v713 = vsel %vm705, 1, 0
      %v714 = vsel %vm706, 1, 0
      %v715 = vsel %vm707, 1, 0
      %v716 = vsel %vm708, 1, 0
      %v717 = vsel %vm709, 1, 0
      %vm718 = vcmp.eq.s32.totalorder %v710, 1
      %vm719 = vcmp.eq.s32.totalorder %v711, 1
      %vm720 = vcmp.eq.s32.totalorder %v712, 1
      %vm721 = vcmp.eq.s32.totalorder %v713, 1
      %vm722 = vcmp.eq.s32.totalorder %v714, 1
      %vm723 = vcmp.eq.s32.totalorder %v715, 1
      %vm724 = vcmp.eq.s32.totalorder %v716, 1
      %vm725 = vcmp.eq.s32.totalorder %v717, 1
      %v726 = vlaneseq
      %v727 = vshrl.u32 %v726, 7
      %v728 = vsub.s32 2, %v727
      %v729 = vrot.slane %v573, %v728
      %v730 = vsel %vm718, %v729, %v694
      %v731 = vsel %vm719, %v729, %v695
      %v732 = vsel %vm720, %v729, %v696
      %v733 = vsel %vm721, %v729, %v697
      %v734 = vsel %vm722, %v729, %v698
      %v735 = vsel %vm723, %v729, %v699
      %v736 = vsel %vm724, %v729, %v700
      %v737 = vsel %vm725, %v729, %v701
      %vm738 = vcmp.eq.s32.totalorder %v580, 3
      %vm739 = vcmp.eq.s32.totalorder %v587, 3
      %vm740 = vcmp.eq.s32.totalorder %v594, 3
      %vm741 = vcmp.eq.s32.totalorder %v601, 3
      %vm742 = vcmp.eq.s32.totalorder %v608, 3
      %vm743 = vcmp.eq.s32.totalorder %v615, 3
      %vm744 = vcmp.eq.s32.totalorder %v622, 3
      %vm745 = vcmp.eq.s32.totalorder %v629, 3
      %v746 = vsel %vm738, 1, 0
      %v747 = vsel %vm739, 1, 0
      %v748 = vsel %vm740, 1, 0
      %v749 = vsel %vm741, 1, 0
      %v750 = vsel %vm742, 1, 0
      %v751 = vsel %vm743, 1, 0
      %v752 = vsel %vm744, 1, 0
      %v753 = vsel %vm745, 1, 0
      %vm754 = vcmp.eq.s32.totalorder %v746, 1
      %vm755 = vcmp.eq.s32.totalorder %v747, 1
      %vm756 = vcmp.eq.s32.totalorder %v748, 1
      %vm757 = vcmp.eq.s32.totalorder %v749, 1
      %vm758 = vcmp.eq.s32.totalorder %v750, 1
      %vm759 = vcmp.eq.s32.totalorder %v751, 1
      %vm760 = vcmp.eq.s32.totalorder %v752, 1
      %vm761 = vcmp.eq.s32.totalorder %v753, 1
      %v762 = vlaneseq
      %v763 = vshrl.u32 %v762, 7
      %v764 = vsub.s32 3, %v763
      %v765 = vrot.slane %v573, %v764
      %v766 = vsel %vm754, %v765, %v730
      %v767 = vsel %vm755, %v765, %v731
      %v768 = vsel %vm756, %v765, %v732
      %v769 = vsel %vm757, %v765, %v733
      %v770 = vsel %vm758, %v765, %v734
      %v771 = vsel %vm759, %v765, %v735
      %v772 = vsel %vm760, %v765, %v736
      %v773 = vsel %vm761, %v765, %v737
      %vm774 = vcmp.eq.s32.totalorder %v572, 0
      %v775 = vsel %vm774, 1, 0
      %776 = vset.pattern.permute.xlu0 7
      %777 = vperm.xlu0 %776, %v775
      %v778 = vpop.permute.xlu0 %777
      %vm779 = vcmp.eq.s32.totalorder %v778, 1
      %v780 = vsel %vm779, %v657, 0.0
      %vm781 = vcmp.eq.s32.totalorder %v572, 1
      %v782 = vsel %vm781, 1, 0
      %783 = vset.pattern.permute.xlu0 7
      %784 = vperm.xlu0 %783, %v782
      %v785 = vpop.permute.xlu0 %784
      %vm786 = vcmp.eq.s32.totalorder %v785, 1
      %v787 = vsel %vm786, %v693, %v780
      %vm788 = vcmp.eq.s32.totalorder %v572, 2
      %v789 = vsel %vm788, 1, 0
      %790 = vset.pattern.permute.xlu0 7
      %791 = vperm.xlu0 %790, %v789
      %v792 = vpop.permute.xlu0 %791
      %vm793 = vcmp.eq.s32.totalorder %v792, 1
      %v794 = vsel %vm793, %v729, %v787
      %vm795 = vcmp.eq.s32.totalorder %v572, 3
      %v796 = vsel %vm795, 1, 0
      %797 = vset.pattern.permute.xlu0 7
      %798 = vperm.xlu0 %797, %v796
      %v799 = vpop.permute.xlu0 %798
      %vm800 = vcmp.eq.s32.totalorder %v799, 1
      %v801 = vsel %vm800, %v765, %v794
      %v802 = vpack.c.bf16 %v767, %v766
      %v803 = vpack.c.bf16 %v769, %v768
      %v804 = vpack.c.bf16 %v771, %v770
      %v805 = vpack.c.bf16 %v773, %v772
      %v806 = vpack.c.bf16 %v801, %v801
      %v807 = vld [vmem:[%s4] sm:$0xf]
      %v808 = vld [vmem:[%s4 + $0x4] sm:$0xf]
      %v809 = vld [vmem:[%s4 + $0x8] sm:$0xf]
      %v810 = vld [vmem:[%s4 + $0xc] sm:$0xf]
      %v811 = vld [vmem:[%s4 + $0x10] sm:$0xf]
      %v812 = vld [vmem:[%s4 + $0x14] sm:$0xf]
      %v813 = vld [vmem:[%s4 + $0x18] sm:$0xf]
      %v814 = vld [vmem:[%s4 + $0x1c] sm:$0xf]
      %v815 = vld [vmem:[%s5] sm:$0x1]
      %v817 = vlaneseq
      %v818 = vshrl.u32 %v817, 7
      %v819 = vsub.s32 0, %v818
      %v820 = vrot.slane %v815, %v819
      %v830 = vunpack.c.l.b16 %v807
      %v831 = vunpack.c.l.b16 %v808
      %v832 = vunpack.c.l.b16 %v809
      %v833 = vunpack.c.l.b16 %v810
      %v834 = vunpack.c.l.b16 %v811
      %v835 = vunpack.c.l.b16 %v812
      %v836 = vunpack.c.l.b16 %v813
      %v837 = vunpack.c.l.b16 %v814
      %v838 = vpack.c.b16 %v831, %v830
      %v839 = vpack.c.b16 %v833, %v832
      %v840 = vpack.c.b16 %v835, %v834
      %v841 = vpack.c.b16 %v837, %v836
      %vm846 = vcmask 523264
      %v848 = vsel %vm846, %v802, 0
      %v851 = vsel %vm846, %v803, 0
      %v854 = vsel %vm846, %v804, 0
      %v857 = vsel %vm846, %v805, 0
      %859 = vmatprep.subr.bf16.mxu0 0
      %860 = vmatpush1.bf16.msra.mxu0 0
      %861 = vmatprep.subr.bf16.mxu0 0
      %862 = vmatpush1.bf16.msra.mxu0 0
      %863 = vmatprep.subr.bf16.mxu0 0
      %864 = vmatpush1.bf16.msra.mxu0 0
      %865 = vmatprep.subr.bf16.mxu0 0
      %866 = vmatpush1.bf16.msra.mxu0 0
      %867 = vmatprep.subr.bf16.mxu0 0
      %868 = vmatpush1.bf16.msra.mxu0 %v841
      %869 = vmatprep.subr.bf16.mxu0 0
      %870 = vmatpush1.bf16.msra.mxu0 %v840
      %871 = vmatprep.subr.bf16.mxu0 0
      %872 = vmatpush1.bf16.msra.mxu0 %v839
      %873 = vmatprep.subr.bf16.mxu0 0
      %874 = vmatpush1.bf16.msra.mxu0 %v838
      %875 = vmatprep.subr.bf16.mxu0 0
      %876 = vmatpush2.bf16.msra.mxu0 0
      %877 = vmatprep.subr.bf16.mxu0 0
      %878 = vmatpush2.bf16.msra.mxu0 0
      %879 = vmatprep.subr.bf16.mxu0 0
      %880 = vmatpush2.bf16.msra.mxu0 0
      %881 = vmatprep.subr.bf16.mxu0 0
      %882 = vmatpush2.bf16.msra.mxu0 0
      %883 = vmatprep.subr.bf16.mxu0 0
      %884 = vmatpush2.bf16.msra.mxu0 0
      %885 = vmatprep.subr.bf16.mxu0 0
      %886 = vmatpush2.bf16.msra.mxu0 0
      %887 = vmatprep.subr.bf16.mxu0 0
      %888 = vmatpush2.bf16.msra.mxu0 0
      %889 = vmatprep.subr.bf16.mxu0 0
      %890 = vmatpush2.bf16.msra.mxu0 0
      %891 = vmatprep.mubr.bf16.mxu0 0
      %892 = vmatmul.mubr.bf16.gmra.mxu0 %v848
      %v893 = vpop.f32.mrf.mxu0
      %v894 = vadd.f32 %v820, %v893
      %v895 = vpop.f32.mrf.mxu0
      %v896 = vpop.f32.mrf.mxu0
      %v897 = vadd.f32 %v820, %v896
      %v898 = vpop.f32.mrf.mxu0
      %899 = vmatprep.mubr.bf16.mxu0 0
      %900 = vmatmul.mubr.bf16.gmra.mxu0 %v851
      %v901 = vpop.f32.mrf.mxu0
      %v902 = vadd.f32 %v820, %v901
      %v903 = vpop.f32.mrf.mxu0
      %v904 = vpop.f32.mrf.mxu0
      %v905 = vadd.f32 %v820, %v904
      %v906 = vpop.f32.mrf.mxu0
      %907 = vmatprep.mubr.bf16.mxu0 0
      %908 = vmatmul.mubr.bf16.gmra.mxu0 %v854
      %v909 = vpop.f32.mrf.mxu0
      %v910 = vadd.f32 %v820, %v909
      %v911 = vpop.f32.mrf.mxu0
      %v912 = vpop.f32.mrf.mxu0
      %v913 = vadd.f32 %v820, %v912
      %v914 = vpop.f32.mrf.mxu0
      %915 = vmatprep.mubr.bf16.mxu0 0
      %916 = vmatmul.mubr.bf16.gmra.mxu0 %v857
      %v917 = vpop.f32.mrf.mxu0
      %v918 = vadd.f32 %v820, %v917
      %v919 = vpop.f32.mrf.mxu0
      %v920 = vpop.f32.mrf.mxu0
      %v921 = vadd.f32 %v820, %v920
      %v922 = vpop.f32.mrf.mxu0
      %923 = vdwg.mxu0
      %v924 = vld [vmem:[%s2] sm:$0xf]
      %v925 = vld [vmem:[%s2 + $0x4] sm:$0xf]
      %v926 = vld [vmem:[%s2 + $0x8] sm:$0xf]
      %v927 = vld [vmem:[%s2 + $0xc] sm:$0xf]
      %v928 = vld [vmem:[%s2 + $0x10] sm:$0xf]
      %v929 = vld [vmem:[%s2 + $0x14] sm:$0xf]
      %v930 = vld [vmem:[%s2 + $0x18] sm:$0xf]
      %v931 = vld [vmem:[%s2 + $0x1c] sm:$0xf]
      %v932 = vld [vmem:[%s3] sm:$0x1]
      %v934 = vlaneseq
      %v935 = vshrl.u32 %v934, 7
      %v936 = vsub.s32 0, %v935
      %v937 = vrot.slane %v932, %v936
      %v947 = vunpack.c.l.b16 %v924
      %v948 = vunpack.c.l.b16 %v925
      %v949 = vunpack.c.l.b16 %v926
      %v950 = vunpack.c.l.b16 %v927
      %v951 = vunpack.c.l.b16 %v928
      %v952 = vunpack.c.l.b16 %v929
      %v953 = vunpack.c.l.b16 %v930
      %v954 = vunpack.c.l.b16 %v931
      %v955 = vpack.c.b16 %v948, %v947
      %v956 = vpack.c.b16 %v950, %v949
      %v957 = vpack.c.b16 %v952, %v951
      %v958 = vpack.c.b16 %v954, %v953
      %v964 = vsel %vm846, %v806, 0
      %966 = vmatprep.subr.bf16.mxu0 0
      %967 = vmatpush1.bf16.msra.mxu0 0
      %968 = vmatprep.subr.bf16.mxu0 0
      %969 = vmatpush1.bf16.msra.mxu0 0
      %970 = vmatprep.subr.bf16.mxu0 0
      %971 = vmatpush1.bf16.msra.mxu0 0
      %972 = vmatprep.subr.bf16.mxu0 0
      %973 = vmatpush1.bf16.msra.mxu0 0
      %974 = vmatprep.subr.bf16.mxu0 0
      %975 = vmatpush1.bf16.msra.mxu0 %v958
      %976 = vmatprep.subr.bf16.mxu0 0
      %977 = vmatpush1.bf16.msra.mxu0 %v957
      %978 = vmatprep.subr.bf16.mxu0 0
      %979 = vmatpush1.bf16.msra.mxu0 %v956
      %980 = vmatprep.subr.bf16.mxu0 0
      %981 = vmatpush1.bf16.msra.mxu0 %v955
      %982 = vmatprep.subr.bf16.mxu0 0
      %983 = vmatpush2.bf16.msra.mxu0 0
      %984 = vmatprep.subr.bf16.mxu0 0
      %985 = vmatpush2.bf16.msra.mxu0 0
      %986 = vmatprep.subr.bf16.mxu0 0
      %987 = vmatpush2.bf16.msra.mxu0 0
      %988 = vmatprep.subr.bf16.mxu0 0
      %989 = vmatpush2.bf16.msra.mxu0 0
      %990 = vmatprep.subr.bf16.mxu0 0
      %991 = vmatpush2.bf16.msra.mxu0 0
      %992 = vmatprep.subr.bf16.mxu0 0
      %993 = vmatpush2.bf16.msra.mxu0 0
      %994 = vmatprep.subr.bf16.mxu0 0
      %995 = vmatpush2.bf16.msra.mxu0 0
      %996 = vmatprep.subr.bf16.mxu0 0
      %997 = vmatpush2.bf16.msra.mxu0 0
      %998 = vmatprep.mubr.bf16.mxu0 0
      %999 = vmatmul.mubr.bf16.gmra.mxu0 %v964
      %v1000 = vpop.f32.mrf.mxu0
      %v1001 = vadd.f32 %v937, %v1000
      %v1002 = vpop.f32.mrf.mxu0
      %v1003 = vpop.f32.mrf.mxu0
      %v1004 = vpop.f32.mrf.mxu0
      %1005 = vdwg.mxu0
      %v1007 = vcombine.high %v1001, %v1001
      %v1009 = vunpack.c.l.s4 1966171168
      %v1010 = vunpack.c.0.s8 %v1009
      %v1011 = vlaneseq
      %v1012 = vshrl.u32 %v1011, 7
      %v1013 = vsub.s32 %v1010, %v1012
      %v1014 = vrot.slane %v1001, %v1013
      %v1016 = vunpack.c.l.s4 1966171168
      %v1017 = vunpack.c.0.s8 %v1016
      %v1018 = vlaneseq
      %v1019 = vshrl.u32 %v1018, 7
      %v1020 = vsub.s32 %v1017, %v1019
      %v1021 = vrot.slane %v1007, %v1020
      %v1022 = vcombine.high %v1014, %v1014
      %v1023 = vcombine.high %v1021, %v1021
      %v1025 = vunpack.c.l.s4 1966171168
      %v1026 = vunpack.c.0.s8 %v1025
      %v1027 = vlaneseq
      %v1028 = vshrl.u32 %v1027, 7
      %v1029 = vsub.s32 %v1026, %v1028
      %v1030 = vrot.slane %v1014, %v1029
      %v1032 = vunpack.c.l.s4 1966171168
      %v1033 = vunpack.c.0.s8 %v1032
      %v1034 = vlaneseq
      %v1035 = vshrl.u32 %v1034, 7
      %v1036 = vsub.s32 %v1033, %v1035
      %v1037 = vrot.slane %v1021, %v1036
      %v1039 = vunpack.c.l.s4 1966171168
      %v1040 = vunpack.c.0.s8 %v1039
      %v1041 = vlaneseq
      %v1042 = vshrl.u32 %v1041, 7
      %v1043 = vsub.s32 %v1040, %v1042
      %v1044 = vrot.slane %v1022, %v1043
      %v1046 = vunpack.c.l.s4 1966171168
      %v1047 = vunpack.c.0.s8 %v1046
      %v1048 = vlaneseq
      %v1049 = vshrl.u32 %v1048, 7
      %v1050 = vsub.s32 %v1047, %v1049
      %v1051 = vrot.slane %v1023, %v1050
      %v1052 = vcombine.high %v1030, %v1030
      %v1053 = vcombine.high %v1037, %v1037
      %v1054 = vcombine.high %v1044, %v1044
      %v1055 = vcombine.high %v1051, %v1051
      %v1056 = vlaneseq
      %v1057 = vshrl.u32 %v1056, 7
      %v1058 = vsub.s32 0, %v1057
      %v1059 = vrot.slane %v1030, %v1058
      %v1060 = vlaneseq
      %v1061 = vshrl.u32 %v1060, 7
      %v1062 = vsub.s32 0, %v1061
      %v1063 = vrot.slane %v1044, %v1062
      %v1064 = vlaneseq
      %v1065 = vshrl.u32 %v1064, 7
      %v1066 = vsub.s32 0, %v1065
      %v1067 = vrot.slane %v1052, %v1066
      %v1068 = vlaneseq
      %v1069 = vshrl.u32 %v1068, 7
      %v1070 = vsub.s32 0, %v1069
      %v1071 = vrot.slane %v1054, %v1070
      %v1072 = vlaneseq
      %v1073 = vshrl.u32 %v1072, 7
      %v1074 = vsub.s32 0, %v1073
      %v1075 = vrot.slane %v1037, %v1074
      %v1076 = vlaneseq
      %v1077 = vshrl.u32 %v1076, 7
      %v1078 = vsub.s32 0, %v1077
      %v1079 = vrot.slane %v1051, %v1078
      %v1080 = vlaneseq
      %v1081 = vshrl.u32 %v1080, 7
      %v1082 = vsub.s32 0, %v1081
      %v1083 = vrot.slane %v1053, %v1082
      %v1084 = vlaneseq
      %v1085 = vshrl.u32 %v1084, 7
      %v1086 = vsub.s32 0, %v1085
      %v1087 = vrot.slane %v1055, %v1086
      %v1096 = vmul.f32 %v1059, %v894
      %v1097 = vmul.f32 %v1063, %v897
      %v1098 = vmul.f32 %v1067, %v902
      %v1099 = vmul.f32 %v1071, %v905
      %v1100 = vmul.f32 %v1075, %v910
      %v1101 = vmul.f32 %v1079, %v913
      %v1102 = vmul.f32 %v1083, %v918
      %v1103 = vmul.f32 %v1087, %v921
      %vm1104 = vcmask 261120
      %v1105 = vsel %vm1104, %v1096, 0.0
      %1106 = vadd.xlane.f32.xlu0 %v1105
      %v1107 = vpop.xlane.xlu0 %1106
      %v1108 = vsel %vm1104, %v1097, 0.0
      %1109 = vadd.xlane.f32.xlu0 %v1108
      %v1110 = vpop.xlane.xlu0 %1109
      %v1111 = vsel %vm1104, %v1098, 0.0
      %1112 = vadd.xlane.f32.xlu0 %v1111
      %v1113 = vpop.xlane.xlu0 %1112
      %v1114 = vsel %vm1104, %v1099, 0.0
      %1115 = vadd.xlane.f32.xlu0 %v1114
      %v1116 = vpop.xlane.xlu0 %1115
      %v1117 = vsel %vm1104, %v1100, 0.0
      %1118 = vadd.xlane.f32.xlu0 %v1117
      %v1119 = vpop.xlane.xlu0 %1118
      %v1120 = vsel %vm1104, %v1101, 0.0
      %1121 = vadd.xlane.f32.xlu0 %v1120
      %v1122 = vpop.xlane.xlu0 %1121
      %v1123 = vsel %vm1104, %v1102, 0.0
      %1124 = vadd.xlane.f32.xlu0 %v1123
      %v1125 = vpop.xlane.xlu0 %1124
      %v1126 = vsel %vm1104, %v1103, 0.0
      %1127 = vadd.xlane.f32.xlu0 %v1126
      %v1128 = vpop.xlane.xlu0 %1127
      %v1129 = vmul.f32 %v1107, 0.17677669
      %v1130 = vmul.f32 %v1110, 0.17677669
      %v1131 = vmul.f32 %v1113, 0.17677669
      %v1132 = vmul.f32 %v1116, 0.17677669
      %v1133 = vmul.f32 %v1119, 0.17677669
      %v1134 = vmul.f32 %v1122, 0.17677669
      %v1135 = vmul.f32 %v1125, 0.17677669
      %v1136 = vmul.f32 %v1128, 0.17677669
      %v1137 = vrot.slane %v1129, 4
      %v1138 = vmax.f32 %v1129, %v1137
      %v1139 = vrot.slane %v1138, 2
      %v1140 = vmax.f32 %v1138, %v1139
      %v1141 = vrot.slane %v1140, 1
      %v1142 = vmax.f32 %v1140, %v1141
      %v1143 = vrot.slane %v1130, 4
      %v1144 = vmax.f32 %v1130, %v1143
      %v1145 = vrot.slane %v1144, 2
      %v1146 = vmax.f32 %v1144, %v1145
      %v1147 = vrot.slane %v1146, 1
      %v1148 = vmax.f32 %v1146, %v1147
      %v1149 = vrot.slane %v1131, 4
      %v1150 = vmax.f32 %v1131, %v1149
      %v1151 = vrot.slane %v1150, 2
      %v1152 = vmax.f32 %v1150, %v1151
      %v1153 = vrot.slane %v1152, 1
      %v1154 = vmax.f32 %v1152, %v1153
      %v1155 = vrot.slane %v1132, 4
      %v1156 = vmax.f32 %v1132, %v1155
      %v1157 = vrot.slane %v1156, 2
      %v1158 = vmax.f32 %v1156, %v1157
      %v1159 = vrot.slane %v1158, 1
      %v1160 = vmax.f32 %v1158, %v1159
      %v1161 = vrot.slane %v1133, 4
      %v1162 = vmax.f32 %v1133, %v1161
      %v1163 = vrot.slane %v1162, 2
      %v1164 = vmax.f32 %v1162, %v1163
      %v1165 = vrot.slane %v1164, 1
      %v1166 = vmax.f32 %v1164, %v1165
      %v1167 = vrot.slane %v1134, 4
      %v1168 = vmax.f32 %v1134, %v1167
      %v1169 = vrot.slane %v1168, 2
      %v1170 = vmax.f32 %v1168, %v1169
      %v1171 = vrot.slane %v1170, 1
      %v1172 = vmax.f32 %v1170, %v1171
      %v1173 = vrot.slane %v1135, 4
      %v1174 = vmax.f32 %v1135, %v1173
      %v1175 = vrot.slane %v1174, 2
      %v1176 = vmax.f32 %v1174, %v1175
      %v1177 = vrot.slane %v1176, 1
      %v1178 = vmax.f32 %v1176, %v1177
      %v1179 = vrot.slane %v1136, 4
      %v1180 = vmax.f32 %v1136, %v1179
      %v1181 = vrot.slane %v1180, 2
      %v1182 = vmax.f32 %v1180, %v1181
      %v1183 = vrot.slane %v1182, 1
      %v1184 = vmax.f32 %v1182, %v1183
      %v1185 = vsub.f32 %v1129, %v1142
      %v1186 = vsub.f32 %v1130, %v1148
      %v1187 = vsub.f32 %v1131, %v1154
      %v1188 = vsub.f32 %v1132, %v1160
      %v1189 = vsub.f32 %v1133, %v1166
      %v1190 = vsub.f32 %v1134, %v1172
      %v1191 = vsub.f32 %v1135, %v1178
      %v1192 = vsub.f32 %v1136, %v1184
      %v1193 = vmul.f32 %v1185, 1.442695
      %v1194 = vpow.pop %v1193
      %v1195 = vmul.f32 %v1186, 1.442695
      %v1196 = vpow.pop %v1195
      %v1197 = vmul.f32 %v1187, 1.442695
      %v1198 = vpow.pop %v1197
      %v1199 = vmul.f32 %v1188, 1.442695
      %v1200 = vpow.pop %v1199
      %v1201 = vmul.f32 %v1189, 1.442695
      %v1202 = vpow.pop %v1201
      %v1203 = vmul.f32 %v1190, 1.442695
      %v1204 = vpow.pop %v1203
      %v1205 = vmul.f32 %v1191, 1.442695
      %v1206 = vpow.pop %v1205
      %v1207 = vmul.f32 %v1192, 1.442695
      %v1208 = vpow.pop %v1207
      %v1209 = vrot.slane %v1194, 4
      %v1210 = vadd.f32 %v1194, %v1209
      %v1211 = vrot.slane %v1210, 2
      %v1212 = vadd.f32 %v1210, %v1211
      %v1213 = vrot.slane %v1212, 1
      %v1214 = vadd.f32 %v1212, %v1213
      %v1215 = vrot.slane %v1196, 4
      %v1216 = vadd.f32 %v1196, %v1215
      %v1217 = vrot.slane %v1216, 2
      %v1218 = vadd.f32 %v1216, %v1217
      %v1219 = vrot.slane %v1218, 1
      %v1220 = vadd.f32 %v1218, %v1219
      %v1221 = vrot.slane %v1198, 4
      %v1222 = vadd.f32 %v1198, %v1221
      %v1223 = vrot.slane %v1222, 2
      %v1224 = vadd.f32 %v1222, %v1223
      %v1225 = vrot.slane %v1224, 1
      %v1226 = vadd.f32 %v1224, %v1225
      %v1227 = vrot.slane %v1200, 4
      %v1228 = vadd.f32 %v1200, %v1227
      %v1229 = vrot.slane %v1228, 2
      %v1230 = vadd.f32 %v1228, %v1229
      %v1231 = vrot.slane %v1230, 1
      %v1232 = vadd.f32 %v1230, %v1231
      %v1233 = vrot.slane %v1202, 4
      %v1234 = vadd.f32 %v1202, %v1233
      %v1235 = vrot.slane %v1234, 2
      %v1236 = vadd.f32 %v1234, %v1235
      %v1237 = vrot.slane %v1236, 1
      %v1238 = vadd.f32 %v1236, %v1237
      %v1239 = vrot.slane %v1204, 4
      %v1240 = vadd.f32 %v1204, %v1239
      %v1241 = vrot.slane %v1240, 2
      %v1242 = vadd.f32 %v1240, %v1241
      %v1243 = vrot.slane %v1242, 1
      %v1244 = vadd.f32 %v1242, %v1243
      %v1245 = vrot.slane %v1206, 4
      %v1246 = vadd.f32 %v1206, %v1245
      %v1247 = vrot.slane %v1246, 2
      %v1248 = vadd.f32 %v1246, %v1247
      %v1249 = vrot.slane %v1248, 1
      %v1250 = vadd.f32 %v1248, %v1249
      %v1251 = vrot.slane %v1208, 4
      %v1252 = vadd.f32 %v1208, %v1251
      %v1253 = vrot.slane %v1252, 2
      %v1254 = vadd.f32 %v1252, %v1253
      %v1255 = vrot.slane %v1254, 1
      %v1256 = vadd.f32 %v1254, %v1255
      %v1257 = vrcp.pop %v1214
      %v1258 = vrcp.pop %v1220
      %v1259 = vrcp.pop %v1226
      %v1260 = vrcp.pop %v1232
      %v1261 = vrcp.pop %v1238
      %v1262 = vrcp.pop %v1244
      %v1263 = vrcp.pop %v1250
      %v1264 = vrcp.pop %v1256
      %v1265 = vmul.f32 %v1194, %v1257
      %v1266 = vmul.f32 %v1196, %v1258
      %v1267 = vmul.f32 %v1198, %v1259
      %v1268 = vmul.f32 %v1200, %v1260
      %v1269 = vmul.f32 %v1202, %v1261
      %v1270 = vmul.f32 %v1204, %v1262
      %v1271 = vmul.f32 %v1206, %v1263
      %v1272 = vmul.f32 %v1208, %v1264
      %v1273 = vmul.f32 %v1265, %v894
      %v1274 = vmul.f32 %v1266, %v897
      %v1275 = vmul.f32 %v1267, %v902
      %v1276 = vmul.f32 %v1268, %v905
      %v1277 = vmul.f32 %v1269, %v910
      %v1278 = vmul.f32 %v1270, %v913
      %v1279 = vmul.f32 %v1271, %v918
      %v1280 = vmul.f32 %v1272, %v921
      %vm1281 = vcmask 785920
      %v1282 = vsel %vm1281, %v1273, 0.0
      %v1283 = vrot.slane %v1282, 4
      %v1284 = vadd.f32 %v1282, %v1283
      %v1285 = vrot.slane %v1284, 2
      %v1286 = vadd.f32 %v1284, %v1285
      %v1287 = vrot.slane %v1286, 1
      %v1288 = vadd.f32 %v1286, %v1287
      %v1289 = vsel %vm1281, %v1274, 0.0
      %v1290 = vrot.slane %v1289, 4
      %v1291 = vadd.f32 %v1289, %v1290
      %v1292 = vrot.slane %v1291, 2
      %v1293 = vadd.f32 %v1291, %v1292
      %v1294 = vrot.slane %v1293, 1
      %v1295 = vadd.f32 %v1293, %v1294
      %v1296 = vsel %vm1281, %v1275, 0.0
      %v1297 = vrot.slane %v1296, 4
      %v1298 = vadd.f32 %v1296, %v1297
      %v1299 = vrot.slane %v1298, 2
      %v1300 = vadd.f32 %v1298, %v1299
      %v1301 = vrot.slane %v1300, 1
      %v1302 = vadd.f32 %v1300, %v1301
      %v1303 = vsel %vm1281, %v1276, 0.0
      %v1304 = vrot.slane %v1303, 4
      %v1305 = vadd.f32 %v1303, %v1304
      %v1306 = vrot.slane %v1305, 2
      %v1307 = vadd.f32 %v1305, %v1306
      %v1308 = vrot.slane %v1307, 1
      %v1309 = vadd.f32 %v1307, %v1308
      %v1310 = vsel %vm1281, %v1277, 0.0
      %v1311 = vrot.slane %v1310, 4
      %v1312 = vadd.f32 %v1310, %v1311
      %v1313 = vrot.slane %v1312, 2
      %v1314 = vadd.f32 %v1312, %v1313
      %v1315 = vrot.slane %v1314, 1
      %v1316 = vadd.f32 %v1314, %v1315
      %v1317 = vsel %vm1281, %v1278, 0.0
      %v1318 = vrot.slane %v1317, 4
      %v1319 = vadd.f32 %v1317, %v1318
      %v1320 = vrot.slane %v1319, 2
      %v1321 = vadd.f32 %v1319, %v1320
      %v1322 = vrot.slane %v1321, 1
      %v1323 = vadd.f32 %v1321, %v1322
      %v1324 = vsel %vm1281, %v1279, 0.0
      %v1325 = vrot.slane %v1324, 4
      %v1326 = vadd.f32 %v1324, %v1325
      %v1327 = vrot.slane %v1326, 2
      %v1328 = vadd.f32 %v1326, %v1327
      %v1329 = vrot.slane %v1328, 1
      %v1330 = vadd.f32 %v1328, %v1329
      %v1331 = vsel %vm1281, %v1280, 0.0
      %v1332 = vrot.slane %v1331, 4
      %v1333 = vadd.f32 %v1331, %v1332
      %v1334 = vrot.slane %v1333, 2
      %v1335 = vadd.f32 %v1333, %v1334
      %v1336 = vrot.slane %v1335, 1
      %v1337 = vadd.f32 %v1335, %v1336
      %1346 = vrot.lane.b32.xlu0 %v1096, 96
      %v1347 = vpop.permute.xlu0 %1346
      %1348 = vrot.lane.b32.xlu0 %v1097, 96
      %v1349 = vpop.permute.xlu0 %1348
      %1350 = vrot.lane.b32.xlu0 %v1098, 96
      %v1351 = vpop.permute.xlu0 %1350
      %1352 = vrot.lane.b32.xlu0 %v1099, 96
      %v1353 = vpop.permute.xlu0 %1352
      %1354 = vrot.lane.b32.xlu0 %v1100, 96
      %v1355 = vpop.permute.xlu0 %1354
      %1356 = vrot.lane.b32.xlu0 %v1101, 96
      %v1357 = vpop.permute.xlu0 %1356
      %1358 = vrot.lane.b32.xlu0 %v1102, 96
      %v1359 = vpop.permute.xlu0 %1358
      %1360 = vrot.lane.b32.xlu0 %v1103, 96
      %v1361 = vpop.permute.xlu0 %1360
      %v1370 = vsel %vm1104, %v1347, 0.0
      %1371 = vadd.xlane.f32.xlu0 %v1370
      %v1372 = vpop.xlane.xlu0 %1371
      %v1373 = vsel %vm1104, %v1349, 0.0
      %1374 = vadd.xlane.f32.xlu0 %v1373
      %v1375 = vpop.xlane.xlu0 %1374
      %v1376 = vsel %vm1104, %v1351, 0.0
      %1377 = vadd.xlane.f32.xlu0 %v1376
      %v1378 = vpop.xlane.xlu0 %1377
      %v1379 = vsel %vm1104, %v1353, 0.0
      %1380 = vadd.xlane.f32.xlu0 %v1379
      %v1381 = vpop.xlane.xlu0 %1380
      %v1382 = vsel %vm1104, %v1355, 0.0
      %1383 = vadd.xlane.f32.xlu0 %v1382
      %v1384 = vpop.xlane.xlu0 %1383
      %v1385 = vsel %vm1104, %v1357, 0.0
      %1386 = vadd.xlane.f32.xlu0 %v1385
      %v1387 = vpop.xlane.xlu0 %1386
      %v1388 = vsel %vm1104, %v1359, 0.0
      %1389 = vadd.xlane.f32.xlu0 %v1388
      %v1390 = vpop.xlane.xlu0 %1389
      %v1391 = vsel %vm1104, %v1361, 0.0
      %1392 = vadd.xlane.f32.xlu0 %v1391
      %v1393 = vpop.xlane.xlu0 %1392
      %v1394 = vmul.f32 %v1372, 0.17677669
      %v1395 = vmul.f32 %v1375, 0.17677669
      %v1396 = vmul.f32 %v1378, 0.17677669
      %v1397 = vmul.f32 %v1381, 0.17677669
      %v1398 = vmul.f32 %v1384, 0.17677669
      %v1399 = vmul.f32 %v1387, 0.17677669
      %v1400 = vmul.f32 %v1390, 0.17677669
      %v1401 = vmul.f32 %v1393, 0.17677669
      %v1402 = vrot.slane %v1394, 4
      %v1403 = vmax.f32 %v1394, %v1402
      %v1404 = vrot.slane %v1403, 2
      %v1405 = vmax.f32 %v1403, %v1404
      %v1406 = vrot.slane %v1405, 1
      %v1407 = vmax.f32 %v1405, %v1406
      %v1408 = vrot.slane %v1395, 4
      %v1409 = vmax.f32 %v1395, %v1408
      %v1410 = vrot.slane %v1409, 2
      %v1411 = vmax.f32 %v1409, %v1410
      %v1412 = vrot.slane %v1411, 1
      %v1413 = vmax.f32 %v1411, %v1412
      %v1414 = vrot.slane %v1396, 4
      %v1415 = vmax.f32 %v1396, %v1414
      %v1416 = vrot.slane %v1415, 2
      %v1417 = vmax.f32 %v1415, %v1416
      %v1418 = vrot.slane %v1417, 1
      %v1419 = vmax.f32 %v1417, %v1418
      %v1420 = vrot.slane %v1397, 4
      %v1421 = vmax.f32 %v1397, %v1420
      %v1422 = vrot.slane %v1421, 2
      %v1423 = vmax.f32 %v1421, %v1422
      %v1424 = vrot.slane %v1423, 1
      %v1425 = vmax.f32 %v1423, %v1424
      %v1426 = vrot.slane %v1398, 4
      %v1427 = vmax.f32 %v1398, %v1426
      %v1428 = vrot.slane %v1427, 2
      %v1429 = vmax.f32 %v1427, %v1428
      %v1430 = vrot.slane %v1429, 1
      %v1431 = vmax.f32 %v1429, %v1430
      %v1432 = vrot.slane %v1399, 4
      %v1433 = vmax.f32 %v1399, %v1432
      %v1434 = vrot.slane %v1433, 2
      %v1435 = vmax.f32 %v1433, %v1434
      %v1436 = vrot.slane %v1435, 1
      %v1437 = vmax.f32 %v1435, %v1436
      %v1438 = vrot.slane %v1400, 4
      %v1439 = vmax.f32 %v1400, %v1438
      %v1440 = vrot.slane %v1439, 2
      %v1441 = vmax.f32 %v1439, %v1440
      %v1442 = vrot.slane %v1441, 1
      %v1443 = vmax.f32 %v1441, %v1442
      %v1444 = vrot.slane %v1401, 4
      %v1445 = vmax.f32 %v1401, %v1444
      %v1446 = vrot.slane %v1445, 2
      %v1447 = vmax.f32 %v1445, %v1446
      %v1448 = vrot.slane %v1447, 1
      %v1449 = vmax.f32 %v1447, %v1448
      %v1450 = vsub.f32 %v1394, %v1407
      %v1451 = vsub.f32 %v1395, %v1413
      %v1452 = vsub.f32 %v1396, %v1419
      %v1453 = vsub.f32 %v1397, %v1425
      %v1454 = vsub.f32 %v1398, %v1431
      %v1455 = vsub.f32 %v1399, %v1437
      %v1456 = vsub.f32 %v1400, %v1443
      %v1457 = vsub.f32 %v1401, %v1449
      %v1458 = vmul.f32 %v1450, 1.442695
      %v1459 = vpow.pop %v1458
      %v1460 = vmul.f32 %v1451, 1.442695
      %v1461 = vpow.pop %v1460
      %v1462 = vmul.f32 %v1452, 1.442695
      %v1463 = vpow.pop %v1462
      %v1464 = vmul.f32 %v1453, 1.442695
      %v1465 = vpow.pop %v1464
      %v1466 = vmul.f32 %v1454, 1.442695
      %v1467 = vpow.pop %v1466
      %v1468 = vmul.f32 %v1455, 1.442695
      %v1469 = vpow.pop %v1468
      %v1470 = vmul.f32 %v1456, 1.442695
      %v1471 = vpow.pop %v1470
      %v1472 = vmul.f32 %v1457, 1.442695
      %v1473 = vpow.pop %v1472
      %v1474 = vrot.slane %v1459, 4
      %v1475 = vadd.f32 %v1459, %v1474
      %v1476 = vrot.slane %v1475, 2
      %v1477 = vadd.f32 %v1475, %v1476
      %v1478 = vrot.slane %v1477, 1
      %v1479 = vadd.f32 %v1477, %v1478
      %v1480 = vrot.slane %v1461, 4
      %v1481 = vadd.f32 %v1461, %v1480
      %v1482 = vrot.slane %v1481, 2
      %v1483 = vadd.f32 %v1481, %v1482
      %v1484 = vrot.slane %v1483, 1
      %v1485 = vadd.f32 %v1483, %v1484
      %v1486 = vrot.slane %v1463, 4
      %v1487 = vadd.f32 %v1463, %v1486
      %v1488 = vrot.slane %v1487, 2
      %v1489 = vadd.f32 %v1487, %v1488
      %v1490 = vrot.slane %v1489, 1
      %v1491 = vadd.f32 %v1489, %v1490
      %v1492 = vrot.slane %v1465, 4
      %v1493 = vadd.f32 %v1465, %v1492
      %v1494 = vrot.slane %v1493, 2
      %v1495 = vadd.f32 %v1493, %v1494
      %v1496 = vrot.slane %v1495, 1
      %v1497 = vadd.f32 %v1495, %v1496
      %v1498 = vrot.slane %v1467, 4
      %v1499 = vadd.f32 %v1467, %v1498
      %v1500 = vrot.slane %v1499, 2
      %v1501 = vadd.f32 %v1499, %v1500
      %v1502 = vrot.slane %v1501, 1
      %v1503 = vadd.f32 %v1501, %v1502
      %v1504 = vrot.slane %v1469, 4
      %v1505 = vadd.f32 %v1469, %v1504
      %v1506 = vrot.slane %v1505, 2
      %v1507 = vadd.f32 %v1505, %v1506
      %v1508 = vrot.slane %v1507, 1
      %v1509 = vadd.f32 %v1507, %v1508
      %v1510 = vrot.slane %v1471, 4
      %v1511 = vadd.f32 %v1471, %v1510
      %v1512 = vrot.slane %v1511, 2
      %v1513 = vadd.f32 %v1511, %v1512
      %v1514 = vrot.slane %v1513, 1
      %v1515 = vadd.f32 %v1513, %v1514
      %v1516 = vrot.slane %v1473, 4
      %v1517 = vadd.f32 %v1473, %v1516
      %v1518 = vrot.slane %v1517, 2
      %v1519 = vadd.f32 %v1517, %v1518
      %v1520 = vrot.slane %v1519, 1
      %v1521 = vadd.f32 %v1519, %v1520
      %v1522 = vrcp.pop %v1479
      %v1523 = vrcp.pop %v1485
      %v1524 = vrcp.pop %v1491
      %v1525 = vrcp.pop %v1497
      %v1526 = vrcp.pop %v1503
      %v1527 = vrcp.pop %v1509
      %v1528 = vrcp.pop %v1515
      %v1529 = vrcp.pop %v1521
      %v1530 = vmul.f32 %v1459, %v1522
      %v1531 = vmul.f32 %v1461, %v1523
      %v1532 = vmul.f32 %v1463, %v1524
      %v1533 = vmul.f32 %v1465, %v1525
      %v1534 = vmul.f32 %v1467, %v1526
      %v1535 = vmul.f32 %v1469, %v1527
      %v1536 = vmul.f32 %v1471, %v1528
      %v1537 = vmul.f32 %v1473, %v1529
      %v1538 = vmul.f32 %v1530, %v894
      %v1539 = vmul.f32 %v1531, %v897
      %v1540 = vmul.f32 %v1532, %v902
      %v1541 = vmul.f32 %v1533, %v905
      %v1542 = vmul.f32 %v1534, %v910
      %v1543 = vmul.f32 %v1535, %v913
      %v1544 = vmul.f32 %v1536, %v918
      %v1545 = vmul.f32 %v1537, %v921
      %vm1546 = vcmask 1048320
      %v1547 = vsel %vm1546, %v1538, 0.0
      %v1548 = vrot.slane %v1547, 4
      %v1549 = vadd.f32 %v1547, %v1548
      %v1550 = vrot.slane %v1549, 2
      %v1551 = vadd.f32 %v1549, %v1550
      %v1552 = vrot.slane %v1551, 1
      %v1553 = vadd.f32 %v1551, %v1552
      %v1554 = vsel %vm1546, %v1539, 0.0
      %v1555 = vrot.slane %v1554, 4
      %v1556 = vadd.f32 %v1554, %v1555
      %v1557 = vrot.slane %v1556, 2
      %v1558 = vadd.f32 %v1556, %v1557
      %v1559 = vrot.slane %v1558, 1
      %v1560 = vadd.f32 %v1558, %v1559
      %v1561 = vsel %vm1546, %v1540, 0.0
      %v1562 = vrot.slane %v1561, 4
      %v1563 = vadd.f32 %v1561, %v1562
      %v1564 = vrot.slane %v1563, 2
      %v1565 = vadd.f32 %v1563, %v1564
      %v1566 = vrot.slane %v1565, 1
      %v1567 = vadd.f32 %v1565, %v1566
      %v1568 = vsel %vm1546, %v1541, 0.0
      %v1569 = vrot.slane %v1568, 4
      %v1570 = vadd.f32 %v1568, %v1569
      %v1571 = vrot.slane %v1570, 2
      %v1572 = vadd.f32 %v1570, %v1571
      %v1573 = vrot.slane %v1572, 1
      %v1574 = vadd.f32 %v1572, %v1573
      %v1575 = vsel %vm1546, %v1542, 0.0
      %v1576 = vrot.slane %v1575, 4
      %v1577 = vadd.f32 %v1575, %v1576
      %v1578 = vrot.slane %v1577, 2
      %v1579 = vadd.f32 %v1577, %v1578
      %v1580 = vrot.slane %v1579, 1
      %v1581 = vadd.f32 %v1579, %v1580
      %v1582 = vsel %vm1546, %v1543, 0.0
      %v1583 = vrot.slane %v1582, 4
      %v1584 = vadd.f32 %v1582, %v1583
      %v1585 = vrot.slane %v1584, 2
      %v1586 = vadd.f32 %v1584, %v1585
      %v1587 = vrot.slane %v1586, 1
      %v1588 = vadd.f32 %v1586, %v1587
      %v1589 = vsel %vm1546, %v1544, 0.0
      %v1590 = vrot.slane %v1589, 4
      %v1591 = vadd.f32 %v1589, %v1590
      %v1592 = vrot.slane %v1591, 2
      %v1593 = vadd.f32 %v1591, %v1592
      %v1594 = vrot.slane %v1593, 1
      %v1595 = vadd.f32 %v1593, %v1594
      %v1596 = vsel %vm1546, %v1545, 0.0
      %v1597 = vrot.slane %v1596, 4
      %v1598 = vadd.f32 %v1596, %v1597
      %v1599 = vrot.slane %v1598, 2
      %v1600 = vadd.f32 %v1598, %v1599
      %v1601 = vrot.slane %v1600, 1
      %v1602 = vadd.f32 %v1600, %v1601
      %vm1611 = vcmask 1041409
      %v1612 = vsel %vm1611, %v1295, %v1288
      %vm1613 = vcmask 1042434
      %v1614 = vsel %vm1613, %v1302, %v1612
      %vm1615 = vcmask 1043459
      %v1616 = vsel %vm1615, %v1309, %v1614
      %vm1617 = vcmask 1044484
      %v1618 = vsel %vm1617, %v1316, %v1616
      %vm1619 = vcmask 1045509
      %v1620 = vsel %vm1619, %v1323, %v1618
      %vm1621 = vcmask 1046534
      %v1622 = vsel %vm1621, %v1330, %v1620
      %vm1623 = vcmask 1047559
      %v1624 = vsel %vm1623, %v1337, %v1622
      %1625 = vrot.lane.b32.xlu0 %v1624, 64
      %v1626 = vpop.permute.xlu0 %1625
      %v1636 = vsel %vm1611, %v1560, %v1553
      %v1637 = vsel %vm1613, %v1567, %v1636
      %v1638 = vsel %vm1615, %v1574, %v1637
      %v1639 = vsel %vm1617, %v1581, %v1638
      %v1640 = vsel %vm1619, %v1588, %v1639
      %v1641 = vsel %vm1621, %v1595, %v1640
      %v1642 = vsel %vm1623, %v1602, %v1641
      %1643 = vrot.lane.b32.xlu0 %v1642, 64
      %v1644 = vpop.permute.xlu0 %1643
      %v1646 = vsel %vm1104, %v1626, %v1644
      %v1647 = vpack.c.bf16 %v1646, %v1646
      %v1648 = vld [vmem:[%s6] sm:$0xf]
      %v1649 = vld [vmem:[%s6 + $0x4] sm:$0xf]
      %v1650 = vld [vmem:[%s6 + $0x8] sm:$0xf]
      %v1651 = vld [vmem:[%s6 + $0xc] sm:$0xf]
      %v1652 = vld [vmem:[%s6 + $0x10] sm:$0xf]
      %v1653 = vld [vmem:[%s6 + $0x14] sm:$0xf]
      %v1654 = vld [vmem:[%s6 + $0x18] sm:$0xf]
      %v1655 = vld [vmem:[%s6 + $0x1c] sm:$0xf]
      %v1656 = vld [vmem:[%s7] sm:$0x1]
      %v1658 = vlaneseq
      %v1659 = vshrl.u32 %v1658, 7
      %v1660 = vsub.s32 0, %v1659
      %v1661 = vrot.slane %v1656, %v1660
      %v1671 = vunpack.c.l.b16 %v1648
      %v1672 = vunpack.c.l.b16 %v1649
      %v1673 = vunpack.c.l.b16 %v1650
      %v1674 = vunpack.c.l.b16 %v1651
      %v1675 = vunpack.c.l.b16 %v1652
      %v1676 = vunpack.c.l.b16 %v1653
      %v1677 = vunpack.c.l.b16 %v1654
      %v1678 = vunpack.c.l.b16 %v1655
      %v1679 = vpack.c.b16 %v1672, %v1671
      %v1680 = vpack.c.b16 %v1674, %v1673
      %v1681 = vpack.c.b16 %v1676, %v1675
      %v1682 = vpack.c.b16 %v1678, %v1677
      %v1688 = vsel %vm846, %v1647, 0
      %1690 = vmatprep.subr.bf16.mxu0 0
      %1691 = vmatpush1.bf16.msra.mxu0 0
      %1692 = vmatprep.subr.bf16.mxu0 0
      %1693 = vmatpush1.bf16.msra.mxu0 0
      %1694 = vmatprep.subr.bf16.mxu0 0
      %1695 = vmatpush1.bf16.msra.mxu0 0
      %1696 = vmatprep.subr.bf16.mxu0 0
      %1697 = vmatpush1.bf16.msra.mxu0 0
      %1698 = vmatprep.subr.bf16.mxu0 0
      %1699 = vmatpush1.bf16.msra.mxu0 %v1682
      %1700 = vmatprep.subr.bf16.mxu0 0
      %1701 = vmatpush1.bf16.msra.mxu0 %v1681
      %1702 = vmatprep.subr.bf16.mxu0 0
      %1703 = vmatpush1.bf16.msra.mxu0 %v1680
      %1704 = vmatprep.subr.bf16.mxu0 0
      %1705 = vmatpush1.bf16.msra.mxu0 %v1679
      %1706 = vmatprep.subr.bf16.mxu0 0
      %1707 = vmatpush2.bf16.msra.mxu0 0
      %1708 = vmatprep.subr.bf16.mxu0 0
      %1709 = vmatpush2.bf16.msra.mxu0 0
      %1710 = vmatprep.subr.bf16.mxu0 0
      %1711 = vmatpush2.bf16.msra.mxu0 0
      %1712 = vmatprep.subr.bf16.mxu0 0
      %1713 = vmatpush2.bf16.msra.mxu0 0
      %1714 = vmatprep.subr.bf16.mxu0 0
      %1715 = vmatpush2.bf16.msra.mxu0 0
      %1716 = vmatprep.subr.bf16.mxu0 0
      %1717 = vmatpush2.bf16.msra.mxu0 0
      %1718 = vmatprep.subr.bf16.mxu0 0
      %1719 = vmatpush2.bf16.msra.mxu0 0
      %1720 = vmatprep.subr.bf16.mxu0 0
      %1721 = vmatpush2.bf16.msra.mxu0 0
      %1722 = vmatprep.mubr.bf16.mxu0 0
      %1723 = vmatmul.mubr.bf16.gmra.mxu0 %v1688
      %v1724 = vpop.f32.mrf.mxu0
      %v1725 = vadd.f32 %v1661, %v1724
      %v1726 = vpop.f32.mrf.mxu0
      %v1727 = vpop.f32.mrf.mxu0
      %v1728 = vpop.f32.mrf.mxu0
      %1729 = vdwg.mxu0
      %v1730 = vadd.f32 %v801, %v1725
      %v1731 = vld [vmem:[%s8] sm:$0x1]
      %v1732 = vld [vmem:[%s9] sm:$0x1]
      %v1733 = vsel %vm846, %v1730, 0.0
      %1734 = vadd.xlane.f32.xlu0 %v1733
      %v1735 = vpop.xlane.xlu0 %1734
      %v1736 = vrcp.pop 64.0
      %v1737 = vmul.f32 %v1735, %v1736
      %v1738 = vsub.f32 %v1730, %v1737
      %v1739 = vmul.f32 %v1738, %v1738
      %v1740 = vsel %vm846, %v1739, 0.0
      %1741 = vadd.xlane.f32.xlu0 %v1740
      %v1742 = vpop.xlane.xlu0 %1741
      %v1743 = vmul.f32 %v1742, %v1736
      %v1744 = vadd.f32 %v1743, 1e-05
      %v1745 = vrsqrt.pop %v1744
      %v1746 = vmul.f32 %v1738, %v1745
      %v1748 = vlaneseq
      %v1749 = vshrl.u32 %v1748, 7
      %v1750 = vsub.s32 0, %v1749
      %v1751 = vrot.slane %v1731, %v1750
      %v1753 = vmul.f32 %v1746, %v1751
      %v1755 = vlaneseq
      %v1756 = vshrl.u32 %v1755, 7
      %v1757 = vsub.s32 0, %v1756
      %v1758 = vrot.slane %v1732, %v1757
      %v1760 = vadd.f32 %v1753, %v1758
      %v1761 = vpack.c.bf16 %v1760, %v1760
      %v1762 = vld [vmem:[%s10] sm:$0xff]
      %v1763 = vld [vmem:[%s10 + $0x8] sm:$0xff]
      %v1764 = vld [vmem:[%s10 + $0x10] sm:$0xff]
      %v1765 = vld [vmem:[%s10 + $0x18] sm:$0xff]
      %v1766 = vld [vmem:[%s10 + $0x20] sm:$0xff]
      %v1767 = vld [vmem:[%s10 + $0x28] sm:$0xff]
      %v1768 = vld [vmem:[%s10 + $0x30] sm:$0xff]
      %v1769 = vld [vmem:[%s10 + $0x38] sm:$0xff]
      %v1770 = vld [vmem:[%s11] sm:$0x3]
      %v1772 = vlaneseq
      %v1773 = vshrl.u32 %v1772, 7
      %v1774 = vsub.s32 0, %v1773
      %v1775 = vrot.slane %v1770, %v1774
      %v1776 = vlaneseq
      %v1777 = vshrl.u32 %v1776, 7
      %v1778 = vsub.s32 1, %v1777
      %v1779 = vrot.slane %v1770, %v1778
      %v1790 = vunpack.c.l.b16 %v1762
      %v1791 = vunpack.c.h.b16 %v1762
      %v1792 = vunpack.c.l.b16 %v1763
      %v1793 = vunpack.c.h.b16 %v1763
      %v1794 = vunpack.c.l.b16 %v1764
      %v1795 = vunpack.c.h.b16 %v1764
      %v1796 = vunpack.c.l.b16 %v1765
      %v1797 = vunpack.c.h.b16 %v1765
      %v1798 = vunpack.c.l.b16 %v1766
      %v1799 = vunpack.c.h.b16 %v1766
      %v1800 = vunpack.c.l.b16 %v1767
      %v1801 = vunpack.c.h.b16 %v1767
      %v1802 = vunpack.c.l.b16 %v1768
      %v1803 = vunpack.c.h.b16 %v1768
      %v1804 = vunpack.c.l.b16 %v1769
      %v1805 = vunpack.c.h.b16 %v1769
      %v1806 = vpack.c.b16 %v1792, %v1790
      %v1807 = vpack.c.b16 %v1793, %v1791
      %v1808 = vpack.c.b16 %v1796, %v1794
      %v1809 = vpack.c.b16 %v1797, %v1795
      %v1810 = vpack.c.b16 %v1800, %v1798
      %v1811 = vpack.c.b16 %v1801, %v1799
      %v1812 = vpack.c.b16 %v1804, %v1802
      %v1813 = vpack.c.b16 %v1805, %v1803
      %v1823 = vsel %vm846, %v1761, 0
      %1825 = vmatprep.subr.bf16.mxu0 0
      %1826 = vmatpush1.bf16.msra.mxu0 0
      %1827 = vmatprep.subr.bf16.mxu0 0
      %1828 = vmatpush1.bf16.msra.mxu0 0
      %1829 = vmatprep.subr.bf16.mxu0 0
      %1830 = vmatpush1.bf16.msra.mxu0 0
      %1831 = vmatprep.subr.bf16.mxu0 0
      %1832 = vmatpush1.bf16.msra.mxu0 0
      %1833 = vmatprep.subr.bf16.mxu0 %v1813
      %1834 = vmatpush1.bf16.msra.mxu0 %v1812
      %1835 = vmatprep.subr.bf16.mxu0 %v1811
      %1836 = vmatpush1.bf16.msra.mxu0 %v1810
      %1837 = vmatprep.subr.bf16.mxu0 %v1809
      %1838 = vmatpush1.bf16.msra.mxu0 %v1808
      %1839 = vmatprep.subr.bf16.mxu0 %v1807
      %1840 = vmatpush1.bf16.msra.mxu0 %v1806
      %1841 = vmatprep.subr.bf16.mxu0 0
      %1842 = vmatpush2.bf16.msra.mxu0 0
      %1843 = vmatprep.subr.bf16.mxu0 0
      %1844 = vmatpush2.bf16.msra.mxu0 0
      %1845 = vmatprep.subr.bf16.mxu0 0
      %1846 = vmatpush2.bf16.msra.mxu0 0
      %1847 = vmatprep.subr.bf16.mxu0 0
      %1848 = vmatpush2.bf16.msra.mxu0 0
      %1849 = vmatprep.subr.bf16.mxu0 0
      %1850 = vmatpush2.bf16.msra.mxu0 0
      %1851 = vmatprep.subr.bf16.mxu0 0
      %1852 = vmatpush2.bf16.msra.mxu0 0
      %1853 = vmatprep.subr.bf16.mxu0 0
      %1854 = vmatpush2.bf16.msra.mxu0 0
      %1855 = vmatprep.subr.bf16.mxu0 0
      %1856 = vmatpush2.bf16.msra.mxu0 0
      %1857 = vmatprep.mubr.bf16.mxu0 0
      %1858 = vmatmul.mubr.bf16.gmra.mxu0 %v1823
      %v1859 = vpop.f32.mrf.mxu0
      %v1860 = vadd.f32 %v1775, %v1859
      %v1861 = vpop.f32.mrf.mxu0
      %v1862 = vadd.f32 %v1779, %v1861
      %v1863 = vpop.f32.mrf.mxu0
      %v1864 = vpop.f32.mrf.mxu0
      %1865 = vdwg.mxu0
      %v1866 = vmax.f32 %v1860, 0.0
      %v1867 = vmax.f32 %v1862, 0.0
      %v1868 = vpack.c.bf16 %v1866, %v1866
      %v1869 = vpack.c.bf16 %v1867, %v1867
      %v1870 = vld [vmem:[%s12] sm:$0xf]
      %v1871 = vld [vmem:[%s12 + $0x4] sm:$0xf]
      %v1872 = vld [vmem:[%s12 + $0x8] sm:$0xf]
      %v1873 = vld [vmem:[%s12 + $0xc] sm:$0xf]
      %v1874 = vld [vmem:[%s12 + $0x10] sm:$0xf]
      %v1875 = vld [vmem:[%s12 + $0x14] sm:$0xf]
      %v1876 = vld [vmem:[%s12 + $0x18] sm:$0xf]
      %v1877 = vld [vmem:[%s12 + $0x1c] sm:$0xf]
      %v1878 = vld [vmem:[%s12 + $0x20] sm:$0xf]
      %v1879 = vld [vmem:[%s12 + $0x24] sm:$0xf]
      %v1880 = vld [vmem:[%s12 + $0x28] sm:$0xf]
      %v1881 = vld [vmem:[%s12 + $0x2c] sm:$0xf]
      %v1882 = vld [vmem:[%s12 + $0x30] sm:$0xf]
      %v1883 = vld [vmem:[%s12 + $0x34] sm:$0xf]
      %v1884 = vld [vmem:[%s12 + $0x38] sm:$0xf]
      %v1885 = vld [vmem:[%s12 + $0x3c] sm:$0xf]
      %v1886 = vld [vmem:[%s12 + $0x40] sm:$0xf]
      %v1887 = vld [vmem:[%s12 + $0x44] sm:$0xf]
      %v1888 = vld [vmem:[%s12 + $0x48] sm:$0xf]
      %v1889 = vld [vmem:[%s12 + $0x4c] sm:$0xf]
      %v1890 = vld [vmem:[%s12 + $0x50] sm:$0xf]
      %v1891 = vld [vmem:[%s12 + $0x54] sm:$0xf]
      %v1892 = vld [vmem:[%s12 + $0x58] sm:$0xf]
      %v1893 = vld [vmem:[%s12 + $0x5c] sm:$0xf]
      %v1894 = vld [vmem:[%s12 + $0x60] sm:$0xf]
      %v1895 = vld [vmem:[%s12 + $0x64] sm:$0xf]
      %v1896 = vld [vmem:[%s12 + $0x68] sm:$0xf]
      %v1897 = vld [vmem:[%s12 + $0x6c] sm:$0xf]
      %v1898 = vld [vmem:[%s12 + $0x70] sm:$0xf]
      %v1899 = vld [vmem:[%s12 + $0x74] sm:$0xf]
      %v1900 = vld [vmem:[%s12 + $0x78] sm:$0xf]
      %v1901 = vld [vmem:[%s12 + $0x7c] sm:$0xf]
      %v1902 = vld [vmem:[%s13] sm:$0x1]
      %v1904 = vlaneseq
      %v1905 = vshrl.u32 %v1904, 7
      %v1906 = vsub.s32 0, %v1905
      %v1907 = vrot.slane %v1902, %v1906
      %v1941 = vunpack.c.l.b16 %v1870
      %v1942 = vunpack.c.l.b16 %v1871
      %v1943 = vunpack.c.l.b16 %v1872
      %v1944 = vunpack.c.l.b16 %v1873
      %v1945 = vunpack.c.l.b16 %v1874
      %v1946 = vunpack.c.l.b16 %v1875
      %v1947 = vunpack.c.l.b16 %v1876
      %v1948 = vunpack.c.l.b16 %v1877
      %v1949 = vunpack.c.l.b16 %v1878
      %v1950 = vunpack.c.l.b16 %v1879
      %v1951 = vunpack.c.l.b16 %v1880
      %v1952 = vunpack.c.l.b16 %v1881
      %v1953 = vunpack.c.l.b16 %v1882
      %v1954 = vunpack.c.l.b16 %v1883
      %v1955 = vunpack.c.l.b16 %v1884
      %v1956 = vunpack.c.l.b16 %v1885
      %v1957 = vunpack.c.l.b16 %v1886
      %v1958 = vunpack.c.l.b16 %v1887
      %v1959 = vunpack.c.l.b16 %v1888
      %v1960 = vunpack.c.l.b16 %v1889
      %v1961 = vunpack.c.l.b16 %v1890
      %v1962 = vunpack.c.l.b16 %v1891
      %v1963 = vunpack.c.l.b16 %v1892
      %v1964 = vunpack.c.l.b16 %v1893
      %v1965 = vunpack.c.l.b16 %v1894
      %v1966 = vunpack.c.l.b16 %v1895
      %v1967 = vunpack.c.l.b16 %v1896
      %v1968 = vunpack.c.l.b16 %v1897
      %v1969 = vunpack.c.l.b16 %v1898
      %v1970 = vunpack.c.l.b16 %v1899
      %v1971 = vunpack.c.l.b16 %v1900
      %v1972 = vunpack.c.l.b16 %v1901
      %v1973 = vpack.c.b16 %v1942, %v1941
      %v1974 = vpack.c.b16 %v1944, %v1943
      %v1975 = vpack.c.b16 %v1946, %v1945
      %v1976 = vpack.c.b16 %v1948, %v1947
      %v1977 = vpack.c.b16 %v1950, %v1949
      %v1978 = vpack.c.b16 %v1952, %v1951
      %v1979 = vpack.c.b16 %v1954, %v1953
      %v1980 = vpack.c.b16 %v1956, %v1955
      %v1981 = vpack.c.b16 %v1958, %v1957
      %v1982 = vpack.c.b16 %v1960, %v1959
      %v1983 = vpack.c.b16 %v1962, %v1961
      %v1984 = vpack.c.b16 %v1964, %v1963
      %v1985 = vpack.c.b16 %v1966, %v1965
      %v1986 = vpack.c.b16 %v1968, %v1967
      %v1987 = vpack.c.b16 %v1970, %v1969
      %v1988 = vpack.c.b16 %v1972, %v1971
      %2005 = vmatprep.subr.bf16.mxu0 0
      %2006 = vmatpush1.bf16.msra.mxu0 %v1980
      %2007 = vmatprep.subr.bf16.mxu0 0
      %2008 = vmatpush1.bf16.msra.mxu0 %v1979
      %2009 = vmatprep.subr.bf16.mxu0 0
      %2010 = vmatpush1.bf16.msra.mxu0 %v1978
      %2011 = vmatprep.subr.bf16.mxu0 0
      %2012 = vmatpush1.bf16.msra.mxu0 %v1977
      %2013 = vmatprep.subr.bf16.mxu0 0
      %2014 = vmatpush1.bf16.msra.mxu0 %v1976
      %2015 = vmatprep.subr.bf16.mxu0 0
      %2016 = vmatpush1.bf16.msra.mxu0 %v1975
      %2017 = vmatprep.subr.bf16.mxu0 0
      %2018 = vmatpush1.bf16.msra.mxu0 %v1974
      %2019 = vmatprep.subr.bf16.mxu0 0
      %2020 = vmatpush1.bf16.msra.mxu0 %v1973
      %2021 = vmatprep.subr.bf16.mxu0 0
      %2022 = vmatpush2.bf16.msra.mxu0 %v1988
      %2023 = vmatprep.subr.bf16.mxu0 0
      %2024 = vmatpush2.bf16.msra.mxu0 %v1987
      %2025 = vmatprep.subr.bf16.mxu0 0
      %2026 = vmatpush2.bf16.msra.mxu0 %v1986
      %2027 = vmatprep.subr.bf16.mxu0 0
      %2028 = vmatpush2.bf16.msra.mxu0 %v1985
      %2029 = vmatprep.subr.bf16.mxu0 0
      %2030 = vmatpush2.bf16.msra.mxu0 %v1984
      %2031 = vmatprep.subr.bf16.mxu0 0
      %2032 = vmatpush2.bf16.msra.mxu0 %v1983
      %2033 = vmatprep.subr.bf16.mxu0 0
      %2034 = vmatpush2.bf16.msra.mxu0 %v1982
      %2035 = vmatprep.subr.bf16.mxu0 0
      %2036 = vmatpush2.bf16.msra.mxu0 %v1981
      %2037 = vmatprep.mubr.bf16.mxu0 %v1869
      %2038 = vmatmul.mubr.bf16.gmra.mxu0 %v1868
      %v2039 = vpop.f32.mrf.mxu0
      %v2040 = vadd.f32 %v1907, %v2039
      %v2041 = vpop.f32.mrf.mxu0
      %v2042 = vpop.f32.mrf.mxu0
      %v2043 = vpop.f32.mrf.mxu0
      %2044 = vdwg.mxu0
      %v2045 = vadd.f32 %v1760, %v2040
      %v2046 = vld [vmem:[%s14] sm:$0x1]
      %v2047 = vld [vmem:[%s15] sm:$0x1]
      %v2048 = vsel %vm846, %v2045, 0.0
      %2049 = vadd.xlane.f32.xlu0 %v2048
      %v2050 = vpop.xlane.xlu0 %2049
      %v2051 = vmul.f32 %v2050, %v1736
      %v2052 = vsub.f32 %v2045, %v2051
      %v2053 = vmul.f32 %v2052, %v2052
      %v2054 = vsel %vm846, %v2053, 0.0
      %2055 = vadd.xlane.f32.xlu0 %v2054
      %v2056 = vpop.xlane.xlu0 %2055
      %v2057 = vmul.f32 %v2056, %v1736
      %v2058 = vadd.f32 %v2057, 1e-05
      %v2059 = vrsqrt.pop %v2058
      %v2060 = vmul.f32 %v2052, %v2059
      %v2062 = vlaneseq
      %v2063 = vshrl.u32 %v2062, 7
      %v2064 = vsub.s32 0, %v2063
      %v2065 = vrot.slane %v2046, %v2064
      %v2067 = vmul.f32 %v2060, %v2065
      %v2069 = vlaneseq
      %v2070 = vshrl.u32 %v2069, 7
      %v2071 = vsub.s32 0, %v2070
      %v2072 = vrot.slane %v2047, %v2071
      %v2074 = vadd.f32 %v2067, %v2072
      %v2075 = vpack.c.bf16 %v2074, %v2074
      %v2076 = vld [vmem:[%s16] sm:$0xf]
      %v2077 = vld [vmem:[%s16 + $0x4] sm:$0xf]
      %v2078 = vld [vmem:[%s16 + $0x8] sm:$0xf]
      %v2079 = vld [vmem:[%s16 + $0xc] sm:$0xf]
      %v2080 = vld [vmem:[%s16 + $0x10] sm:$0xf]
      %v2081 = vld [vmem:[%s16 + $0x14] sm:$0xf]
      %v2082 = vld [vmem:[%s16 + $0x18] sm:$0xf]
      %v2083 = vld [vmem:[%s16 + $0x1c] sm:$0xf]
      %v2084 = vld [vmem:[%s17] sm:$0x1]
      %v2086 = vlaneseq
      %v2087 = vshrl.u32 %v2086, 7
      %v2088 = vsub.s32 0, %v2087
      %v2089 = vrot.slane %v2084, %v2088
      %v2099 = vunpack.c.l.b16 %v2076
      %v2100 = vunpack.c.l.b16 %v2077
      %v2101 = vunpack.c.l.b16 %v2078
      %v2102 = vunpack.c.l.b16 %v2079
      %v2103 = vunpack.c.l.b16 %v2080
      %v2104 = vunpack.c.l.b16 %v2081
      %v2105 = vunpack.c.l.b16 %v2082
      %v2106 = vunpack.c.l.b16 %v2083
      %v2107 = vpack.c.b16 %v2100, %v2099
      %v2108 = vpack.c.b16 %v2102, %v2101
      %v2109 = vpack.c.b16 %v2104, %v2103
      %v2110 = vpack.c.b16 %v2106, %v2105
      %v2116 = vsel %vm846, %v2075, 0
      %2118 = vmatprep.subr.bf16.mxu0 0
      %2119 = vmatpush1.bf16.msra.mxu0 0
      %2120 = vmatprep.subr.bf16.mxu0 0
      %2121 = vmatpush1.bf16.msra.mxu0 0
      %2122 = vmatprep.subr.bf16.mxu0 0
      %2123 = vmatpush1.bf16.msra.mxu0 0
      %2124 = vmatprep.subr.bf16.mxu0 0
      %2125 = vmatpush1.bf16.msra.mxu0 0
      %2126 = vmatprep.subr.bf16.mxu0 0
      %2127 = vmatpush1.bf16.msra.mxu0 %v2110
      %2128 = vmatprep.subr.bf16.mxu0 0
      %2129 = vmatpush1.bf16.msra.mxu0 %v2109
      %2130 = vmatprep.subr.bf16.mxu0 0
      %2131 = vmatpush1.bf16.msra.mxu0 %v2108
      %2132 = vmatprep.subr.bf16.mxu0 0
      %2133 = vmatpush1.bf16.msra.mxu0 %v2107
      %2134 = vmatprep.subr.bf16.mxu0 0
      %2135 = vmatpush2.bf16.msra.mxu0 0
      %2136 = vmatprep.subr.bf16.mxu0 0
      %2137 = vmatpush2.bf16.msra.mxu0 0
      %2138 = vmatprep.subr.bf16.mxu0 0
      %2139 = vmatpush2.bf16.msra.mxu0 0
      %2140 = vmatprep.subr.bf16.mxu0 0
      %2141 = vmatpush2.bf16.msra.mxu0 0
      %2142 = vmatprep.subr.bf16.mxu0 0
      %2143 = vmatpush2.bf16.msra.mxu0 0
      %2144 = vmatprep.subr.bf16.mxu0 0
      %2145 = vmatpush2.bf16.msra.mxu0 0
      %2146 = vmatprep.subr.bf16.mxu0 0
      %2147 = vmatpush2.bf16.msra.mxu0 0
      %2148 = vmatprep.subr.bf16.mxu0 0
      %2149 = vmatpush2.bf16.msra.mxu0 0
      %2150 = vmatprep.mubr.bf16.mxu0 0
      %2151 = vmatmul.mubr.bf16.gmra.mxu0 %v2116
      %v2152 = vpop.f32.mrf.mxu0
      %v2153 = vadd.f32 %v2089, %v2152
      %v2154 = vpop.f32.mrf.mxu0
      %v2155 = vpop.f32.mrf.mxu0
      %v2156 = vpop.f32.mrf.mxu0
      %2157 = vdwg.mxu0
      %2158 = vst [vmem:[%s570] sm:$0xff] %v2153
      %p2159 = scmp.lt.s32.totalorder %s29, 1
      %s2160 = scalar_select %p2159, %s29, 1
      %s2161 = smul.addr %s2160, 8
      %s2162 = scalar_lea.vmem %s18, %s2161
      // Predicated region
      $region93: #{transformer_forward.1} parent=91 // pred_check
        %p2163 = pneg %p430
      $region94: #{transformer_forward.1} parent=91 // pred_check_branch
        %2165 = sbr.rel (%p2163) target = $region96
      $region95: #{transformer_forward.1} parent=91 // pred_region
        _
      $region96: #{transformer_forward.1} parent=91 // pred_fallthru
        _
    $region92: #{transformer_forward.1} parent=5 // pred_fallthru
      _
    %p2166 = scmp.le.s32.totalorder 2, %s24
    // Predicated region
    $region97: #{transformer_forward.1} parent=5 // pred_check
      %p2167 = pneg %p2166
    $region98: #{transformer_forward.1} parent=5 // pred_check_branch
      %2169 = sbr.rel (%p2167) target = $region100
    $region99: #{transformer_forward.1} parent=5 // pred_region
      %s2170 = ssub.s32 %s24, 2
      // Predicated region
      $region101: #{transformer_forward.1} parent=99 // pred_check
        %p2171 = pneg %p436
      $region102: #{transformer_forward.1} parent=99 // pred_check_branch
        %2173 = sbr.rel (%p2171) target = $region104
      $region103: #{transformer_forward.1} parent=99 // pred_region
        %p2174 = scmp.lt.s32.totalorder %s30, 1
        %s2175 = scalar_select %p2174, %s30, 1
        %s2176 = smul.addr %s2175, 8
        %s2177 = scalar_lea.vmem %s18, %s2176
      $region104: #{transformer_forward.1} parent=99 // pred_fallthru
        _
    $region100: #{transformer_forward.1} parent=5 // pred_fallthru
      _
  $region6: #{transformer_forward.1} parent=0 // loop_footer
    %s28 = sadd.s32 1, %s24
  $region7: #{transformer_forward.1} parent=0 // loop_footer_branch
    %23 = sbr.rel target = $region3
  $region8: #{transformer_forward.1} parent=0 // loop_exit
    _

</llo_original>
